<compile_context>
chip_gen: v5e
topology: v5e:2x2
jax: 0.10.0
libtpu: 0.0.40
codegen_flags: <defaults>
</compile_context>

<pallas_src>
import jax
import jax.numpy as jnp
from jax.experimental import pallas as pl
from jax.experimental.pallas import tpu as pltpu

EPS = 1e-5


# ---------------------------------------------------------------------------
# Fused bottleneck kernel
# ---------------------------------------------------------------------------
def _make_bottleneck_kernel(th, wi, wp, cin, p, c4, nb, leaky):
    """th: output rows per step, wi: image width, wp: padded width (mult of 8),
    cin: input channels (== c4 for identity residual), p: planes, nb: #row blocks."""

    def act(v):
        if leaky:
            return jnp.where(v > 0, v, 0.01 * v)
        return jnp.maximum(v, 0.0)

    def kernel(w1_ref, b1_ref, w2_ref, b2_ref, w3_ref, b3_ref, xp_ref,
               o_ref, xh_ref, sem_ref):
        ni = pl.program_id(0)
        bi = pl.program_id(1)

        # -- manual DMA of the haloed input window: padded rows
        #    [bi*th, bi*th + th + 2) of image ni (contiguous in HBM) ----------
        row0 = pl.multiple_of(bi * th, th)
        cp = pltpu.make_async_copy(xp_ref.at[ni, pl.ds(row0, th + 2)],
                                   xh_ref, sem_ref)
        cp.start()
        cp.wait()
        xh = xh_ref[...]                                  # (th+2, wp, cin) bf16

        # -- conv1 (1x1) + bn1 + act, computed on the haloed window -----------
        h1 = jnp.dot(xh.reshape((th + 2) * wp, cin), w1_ref[...],
                     preferred_element_type=jnp.float32) + b1_ref[...]
        h1 = act(h1).reshape(th + 2, wp, p)

        # zero conv2's zero-padding ring: columns outside [1, wi] always;
        # the top/bottom halo row only when it falls outside the image.
        col = jax.lax.broadcasted_iota(jnp.int32, (1, wp, 1), 1)
        row = jax.lax.broadcasted_iota(jnp.int32, (th + 2, 1, 1), 0)
        keep = (col >= 1) & (col <= wi)
        keep = keep & ((bi > 0) | (row >= 1))
        keep = keep & ((bi < nb - 1) | (row <= th))
        h1 = jnp.where(keep, h1, 0.0).astype(jnp.bfloat16)

        # -- conv2 (3x3, pad=1) + bn2 + act: 9 accumulating GEMMs over shifted
        #    in-VMEM views of h1 (no im2col in HBM) ----------------------------
        acc = jnp.zeros((th * wi, p), jnp.float32)
        for t in range(9):
            kh, kw = divmod(t, 3)
            tap = h1[kh:kh + th, kw:kw + wi, :].reshape(th * wi, p)
            acc = acc + jnp.dot(tap, w2_ref[t],
                                preferred_element_type=jnp.float32)
        h2 = act(acc + b2_ref[...]).astype(jnp.bfloat16)

        # -- conv3 (1x1) + bn3 + identity residual + act -----------------------
        res = xh[1:th + 1, 1:wi + 1, :].reshape(th * wi, cin).astype(jnp.float32)
        y = jnp.dot(h2, w3_ref[...], preferred_element_type=jnp.float32)
        y = act(y + b3_ref[...] + res)
        o_ref[...] = y.reshape(1, th, wi, c4).astype(o_ref.dtype)

    return kernel


def _pick_block_h(n, h, w, target_rows=1024, min_steps=8):
    """Largest divisor of h with ~target_rows GEMM rows per step, shrunk until
    the grid has enough steps to feed both v7x TensorCores / the pipeline."""
    divs = [d for d in range(1, h + 1) if h % d == 0]
    fits = [d for d in divs if d * w <= target_rows]
    th = max(fits) if fits else 1
    while n * (h // th) < min_steps:
        smaller = [d for d in divs if d < th]
        if not smaller:
            break
        th = max(smaller)
    return th


def bottleneck_forward(x_nchw, params, stride=1, non_linearity_ty="relu",
                       block_h=None):
    assert stride == 1, "only the identity-residual path (stride=1, downsample=None)"
    n, c, h, w = x_nchw.shape
    cin, p = params["w1"].shape
    p3, c4 = params["w3"].shape
    assert c == cin and p3 == p and c4 == c, \
        "identity residual requires in_planes == expansion * planes"

    th = block_h or _pick_block_h(n, h, w)
    assert h % th == 0
    nb = h // th
    wp = ((w + 2 + 7) // 8) * 8        # pad width to a sublane multiple

    # one-time layout pass: NCHW -> NHWC (bf16) + spatial zero-pad for the halo
    x_nhwc = jnp.transpose(x_nchw, (0, 2, 3, 1)).astype(jnp.bfloat16)
    xp = jnp.pad(x_nhwc, ((0, 0), (1, 1), (1, wp - w - 1), (0, 0)))

    kernel = _make_bottleneck_kernel(th, w, wp, cin, p, c4, nb,
                                     leaky=(non_linearity_ty != "relu"))

    out = pl.pallas_call(
        kernel,
        out_shape=jax.ShapeDtypeStruct((n, h, w, c4), jnp.bfloat16),
        grid=(n, nb),
        in_specs=[
            pl.BlockSpec((cin, p), lambda ni, bi: (0, 0)),        # w1 (resident)
            pl.BlockSpec((1, p), lambda ni, bi: (0, 0)),          # b1
            pl.BlockSpec((9, p, p), lambda ni, bi: (0, 0, 0)),    # w2 (9 taps)
            pl.BlockSpec((1, p), lambda ni, bi: (0, 0)),          # b2
            pl.BlockSpec((p, c4), lambda ni, bi: (0, 0)),         # w3
            pl.BlockSpec((1, c4), lambda ni, bi: (0, 0)),         # b3
            pl.BlockSpec(memory_space=pl.ANY),                    # xp (manual halo DMA)
        ],
        out_specs=pl.BlockSpec((1, th, w, c4), lambda ni, bi: (ni, bi, 0, 0)),
        scratch_shapes=[
            pltpu.VMEM((th + 2, wp, cin), jnp.bfloat16),          # haloed x window
            pltpu.SemaphoreType.DMA(()),
        ],
        compiler_params=pltpu.CompilerParams(
            dimension_semantics=("parallel", "parallel"),
            vmem_limit_bytes=48 * 1024 * 1024,   # safe on v5e/v6e/v7x (64 MiB phys)
        ),
    )(params["w1"], params["b1"], params["w2"], params["b2"],
      params["w3"], params["b3"], xp)

    return jnp.transpose(out, (0, 3, 1, 2))      # back to NCHW (public API parity)


# ---------------------------------------------------------------------------
# Parameters (deterministic) + BatchNorm folding (f32 fold, bf16 weights)
# ---------------------------------------------------------------------------
def init_raw_params(key, in_planes, planes, expansion=4, dtype=jnp.float32):
    ks = jax.random.split(key, 15)

    def bn_params(k0, k1, k2, k3, ch):
        gamma = 1.0 + 0.1 * jax.random.normal(k0, (ch,), dtype)
        beta = 0.1 * jax.random.normal(k1, (ch,), dtype)
        mean = 0.1 * jax.random.normal(k2, (ch,), dtype)
        var = jax.random.uniform(k3, (ch,), dtype, 0.5, 1.5)
        return (gamma, beta, mean, var)

    return {
        "wt1": 0.1 * jax.random.normal(ks[0], (planes, in_planes, 1, 1), dtype),
        "bn1": bn_params(ks[1], ks[2], ks[3], ks[4], planes),
        "wt2": 0.1 * jax.random.normal(ks[5], (planes, planes, 3, 3), dtype),
        "bn2": bn_params(ks[6], ks[7], ks[8], ks[9], planes),
        "wt3": 0.1 * jax.random.normal(ks[10], (expansion * planes, planes, 1, 1), dtype),
        "bn3": bn_params(ks[11], ks[12], ks[13], ks[14], expansion * planes),
    }


def _fold_bn(w_mat, bn):
    """w_mat: (K, Cout); bn = (gamma, beta, mean, var) over Cout.  f32."""
    gamma, beta, mean, var = bn
    scale = gamma / jnp.sqrt(var + EPS)
    return w_mat * scale[None, :], beta - mean * scale


def fold_params(raw, weight_dtype=jnp.bfloat16):
    # conv1: OIHW (P, Cin, 1, 1) -> (Cin, P)
    w1 = jnp.transpose(raw["wt1"][:, :, 0, 0], (1, 0))
    w1, b1 = _fold_bn(w1, raw["bn1"])
    # conv2: OIHW (P, P, 3, 3) -> (kh, kw, Cin, Cout) -> (9, Cin, Cout)
    wt2 = raw["wt2"]
    o_, i_ = wt2.shape[0], wt2.shape[1]
    w2 = jnp.transpose(wt2, (2, 3, 1, 0)).reshape(9 * i_, o_)
    w2, b2 = _fold_bn(w2, raw["bn2"])
    w2 = w2.reshape(9, i_, o_)
    # conv3: OIHW (4P, P, 1, 1) -> (P, 4P)
    w3 = jnp.transpose(raw["wt3"][:, :, 0, 0], (1, 0))
    w3, b3 = _fold_bn(w3, raw["bn3"])
    f32 = jnp.float32
    return {"w1": w1.astype(weight_dtype), "b1": b1.reshape(1, -1).astype(f32),
            "w2": w2.astype(weight_dtype), "b2": b2.reshape(1, -1).astype(f32),
            "w3": w3.astype(weight_dtype), "b3": b3.reshape(1, -1).astype(f32)}


# ---------------------------------------------------------------------------
# References
# ---------------------------------------------------------------------------
def reference_mirror(x_nhwc_bf16, params, non_linearity_ty="relu"):
    """Pure-JAX reference that mirrors the kernel's numerics exactly:
    bf16 storage for x / weights / inter-stage activations, f32 accumulation."""
    act = (jax.nn.relu if non_linearity_ty == "relu"
           else lambda v: jnp.where(v > 0, v, 0.01 * v))
    x = x_nhwc_bf16.astype(jnp.float32)
    n, h, w, _ = x.shape
    w1 = params["w1"].astype(jnp.float32)
    w2 = params["w2"].astype(jnp.float32)
    w3 = params["w3"].astype(jnp.float32)
    h1 = act(jnp.einsum("nhwc,cp->nhwp", x, w1) + params["b1"][0])
    h1 = h1.astype(jnp.bfloat16).astype(jnp.float32)
    h1p = jnp.pad(h1, ((0, 0), (1, 1), (1, 1), (0, 0)))
    acc = jnp.zeros((n, h, w, w2.shape[2]), jnp.float32)
    for t in range(9):
        kh, kw = divmod(t, 3)
        acc = acc + jnp.einsum("nhwc,cp->nhwp",
                               h1p[:, kh:kh + h, kw:kw + w, :], w2[t])
    h2 = act(acc + params["b2"][0]).astype(jnp.bfloat16).astype(jnp.float32)
    y = act(jnp.einsum("nhwp,pq->nhwq", h2, w3) + params["b3"][0] + x)
    return y


def reference_raw_f32(x, raw, stride=1):
    """PyTorch-semantics reference: f32 lax.conv + eval-mode BN + relu."""
    def conv(xx, ww, s=1, pd=0):
        return jax.lax.conv_general_dilated(
            xx, ww, (s, s), [(pd, pd), (pd, pd)],
            dimension_numbers=("NCHW", "OIHW", "NCHW"))

    def bn(xx, prm):
        g, b, m, v = prm
        r = lambda a: a[None, :, None, None]
        return (xx - r(m)) / jnp.sqrt(r(v) + EPS) * r(g) + r(b)

    out = jax.nn.relu(bn(conv(x, raw["wt1"]), raw["bn1"]))
    out = jax.nn.relu(bn(conv(out, raw["wt2"], stride, 1), raw["bn2"]))
    out = bn(conv(out, raw["wt3"]), raw["bn3"])
    return jax.nn.relu(out + x)


if __name__ == "__main__":
    key = jax.random.PRNGKey(0)
    kx, kp = jax.random.split(key)

    # Small but lane-friendly shapes; in_planes == expansion*planes so the
    # module's identity-residual path (stride=1, downsample=None) applies.
    in_planes, planes, expansion = 128, 32, 4
    batch, spatial = 2, 16
    x = jax.random.normal(kx, (batch, in_planes, spatial, spatial), jnp.float32)

    raw = init_raw_params(kp, in_planes, planes, expansion)
    params = fold_params(raw)

    out = jax.block_until_ready(bottleneck_forward(x, params, stride=1))
    assert out.shape == (batch, expansion * planes, spatial, spatial)
    out_f32 = out.astype(jnp.float32)

    # Tight check vs. a reference with identical numerics (bf16 storage, f32 acc).
    x_nhwc_bf16 = jnp.transpose(x, (0, 2, 3, 1)).astype(jnp.bfloat16)
    ref_m = jnp.transpose(reference_mirror(x_nhwc_bf16, params), (0, 3, 1, 2))
    err_m = jnp.max(jnp.abs(out_f32 - ref_m))
    assert jnp.allclose(out_f32, ref_m, atol=1e-2, rtol=1e-2), \
        f"mirror-precision reference mismatch, max err {err_m}"

    # Loose semantic check vs. the full-f32 conv+BN (PyTorch) reference;
    # the gap is only bf16 storage of x / weights / activations.
    ref_f = reference_raw_f32(x, raw, stride=1)
    err_f = jnp.max(jnp.abs(out_f32 - ref_f))
    assert jnp.allclose(out_f32, ref_f, atol=0.15, rtol=0.05), \
        f"f32 reference mismatch, max err {err_f}"

    print("KERNEL_OK")
</pallas_src>

<mosaic_0001>
module attributes {stable_mosaic.version = 11 : i64} {
  func.func @kernel(%arg0: i32, %arg1: i32, %arg2: memref<128x32xbf16, #tpu.memory_space<vmem>>, %arg3: memref<1x32xf32, #tpu.memory_space<vmem>>, %arg4: memref<9x32x32xbf16, #tpu.memory_space<vmem>>, %arg5: memref<1x32xf32, #tpu.memory_space<vmem>>, %arg6: memref<32x128xbf16, #tpu.memory_space<vmem>>, %arg7: memref<1x128xf32, #tpu.memory_space<vmem>>, %arg8: memref<2x18x24x128xbf16, #tpu.memory_space<any>>, %arg9: memref<1x4x16x128xbf16, #tpu.memory_space<vmem>>, %arg10: memref<6x24x128xbf16, #tpu.memory_space<vmem>>, %arg11: memref<!tpu.dma_semaphore, #tpu.memory_space<semaphore_mem>>) attributes {dimension_semantics = [#tpu.dimension_semantics<parallel>, #tpu.dimension_semantics<parallel>], iteration_bounds = array<i64: 2, 4>, scalar_prefetch = 0 : i64, scratch_operands = 2 : i64, tpu.core_type = #tpu.core_type<tc>, window_params = [{pipeline_mode = #tpu.pipeline_mode<synchronous>, transform_indices = @transform_0, window_bounds = array<i64: 128, 32>}, {pipeline_mode = #tpu.pipeline_mode<synchronous>, transform_indices = @transform_1, window_bounds = array<i64: 1, 32>}, {pipeline_mode = #tpu.pipeline_mode<synchronous>, transform_indices = @transform_2, window_bounds = array<i64: 9, 32, 32>}, {pipeline_mode = #tpu.pipeline_mode<synchronous>, transform_indices = @transform_3, window_bounds = array<i64: 1, 32>}, {pipeline_mode = #tpu.pipeline_mode<synchronous>, transform_indices = @transform_4, window_bounds = array<i64: 32, 128>}, {pipeline_mode = #tpu.pipeline_mode<synchronous>, transform_indices = @transform_5, window_bounds = array<i64: 1, 128>}, {}, {transform_indices = @transform_7, window_bounds = array<i64: 1, 4, 16, 128>}]} {
    %c4_i32 = arith.constant 4 : i32
    %0 = arith.muli %arg1, %c4_i32 : i32
    %1 = tpu.assume_multiple %0, 4 : i32
    %c0_i32 = arith.constant 0 : i32
    %c0_i32_0 = arith.constant 0 : i32
    %2 = tpu.memref_slice %arg8[%arg0, %1, %c0_i32, %c0_i32_0] : memref<2x18x24x128xbf16, #tpu.memory_space<any>> -> memref<1x6x24x128xbf16, #tpu.memory_space<any>>
    %3 = tpu.memref_squeeze %2 : memref<1x6x24x128xbf16, #tpu.memory_space<any>> -> memref<6x24x128xbf16, #tpu.memory_space<any>>
    tpu.enqueue_dma source(%3 : memref<6x24x128xbf16, #tpu.memory_space<any>>) target(%arg10 : memref<6x24x128xbf16, #tpu.memory_space<vmem>>) target_semaphore(%arg11 : memref<!tpu.dma_semaphore, #tpu.memory_space<semaphore_mem>>)
    %c0_i32_1 = arith.constant 0 : i32
    %c0_i32_2 = arith.constant 0 : i32
    %4 = tpu.memref_slice %arg8[%arg0, %1, %c0_i32_1, %c0_i32_2] : memref<2x18x24x128xbf16, #tpu.memory_space<any>> -> memref<1x6x24x128xbf16, #tpu.memory_space<any>>
    %5 = tpu.memref_squeeze %4 : memref<1x6x24x128xbf16, #tpu.memory_space<any>> -> memref<6x24x128xbf16, #tpu.memory_space<any>>
    tpu.wait_dma2 semaphore(%arg11 : memref<!tpu.dma_semaphore, #tpu.memory_space<semaphore_mem>>) src(%5 : memref<6x24x128xbf16, #tpu.memory_space<any>>) dst(%arg10 : memref<6x24x128xbf16, #tpu.memory_space<vmem>>)
    %c0 = arith.constant 0 : index
    %c0_3 = arith.constant 0 : index
    %c0_4 = arith.constant 0 : index
    %6 = vector.load %arg10[%c0, %c0_3, %c0_4] : memref<6x24x128xbf16, #tpu.memory_space<vmem>>, vector<6x24x128xbf16>
    %7 = vector.shape_cast %6 : vector<6x24x128xbf16> to vector<144x128xbf16>
    %c0_5 = arith.constant 0 : index
    %c0_6 = arith.constant 0 : index
    %8 = vector.load %arg2[%c0_5, %c0_6] : memref<128x32xbf16, #tpu.memory_space<vmem>>, vector<128x32xbf16>
    %cst = arith.constant dense<0.000000e+00> : vector<144x32xf32>
    %9 = tpu.matmul %7, %8, %cst {dimension_numbers = #tpu.dot_dimension_numbers<[1], [0], [0], [1], [0, 0, 1, 1], [], []>} : vector<144x128xbf16>, vector<128x32xbf16>, vector<144x32xf32> -> vector<144x32xf32>
    %c0_7 = arith.constant 0 : index
    %c0_8 = arith.constant 0 : index
    %10 = vector.load %arg3[%c0_7, %c0_8] : memref<1x32xf32, #tpu.memory_space<vmem>>, vector<1x32xf32>
    %11 = vector.broadcast %10 : vector<1x32xf32> to vector<144x32xf32>
    %12 = arith.addf %9, %11 : vector<144x32xf32>
    %cst_9 = arith.constant 0.000000e+00 : f32
    %13 = vector.broadcast %cst_9 : f32 to vector<144x32xf32>
    %14 = arith.maximumf %12, %13 : vector<144x32xf32>
    %15 = vector.shape_cast %14 : vector<144x32xf32> to vector<6x24x32xf32>
    %16 = tpu.iota {dimensions = array<i32: 1>} : vector<1x24x1xi32>
    %17 = tpu.iota {dimensions = array<i32: 0>} : vector<6x1x1xi32>
    %c1_i32 = arith.constant 1 : i32
    %18 = vector.broadcast %c1_i32 : i32 to vector<1x24x1xi32>
    %19 = arith.cmpi sge, %16, %18 : vector<1x24x1xi32>
    %c16_i32 = arith.constant 16 : i32
    %20 = vector.broadcast %c16_i32 : i32 to vector<1x24x1xi32>
    %21 = arith.cmpi sle, %16, %20 : vector<1x24x1xi32>
    %22 = arith.andi %19, %21 : vector<1x24x1xi1>
    %c0_i32_10 = arith.constant 0 : i32
    %23 = arith.cmpi sgt, %arg1, %c0_i32_10 : i32
    %c1_i32_11 = arith.constant 1 : i32
    %24 = vector.broadcast %c1_i32_11 : i32 to vector<6x1x1xi32>
    %25 = arith.cmpi sge, %17, %24 : vector<6x1x1xi32>
    %26 = vector.broadcast %23 : i1 to vector<6x1x1xi1>
    %27 = arith.ori %26, %25 : vector<6x1x1xi1>
    %28 = vector.broadcast %22 : vector<1x24x1xi1> to vector<6x24x1xi1>
    %29 = vector.broadcast %27 : vector<6x1x1xi1> to vector<6x24x1xi1>
    %30 = arith.andi %28, %29 : vector<6x24x1xi1>
    %c3_i32 = arith.constant 3 : i32
    %31 = arith.cmpi slt, %arg1, %c3_i32 : i32
    %c4_i32_12 = arith.constant 4 : i32
    %32 = vector.broadcast %c4_i32_12 : i32 to vector<6x1x1xi32>
    %33 = arith.cmpi sle, %17, %32 : vector<6x1x1xi32>
    %34 = vector.broadcast %31 : i1 to vector<6x1x1xi1>
    %35 = arith.ori %34, %33 : vector<6x1x1xi1>
    %36 = vector.broadcast %35 : vector<6x1x1xi1> to vector<6x24x1xi1>
    %37 = arith.andi %30, %36 : vector<6x24x1xi1>
    %cst_13 = arith.constant 0.000000e+00 : f32
    %38 = vector.shape_cast %37 : vector<6x24x1xi1> to vector<6x24x1xi1>
    %39 = vector.broadcast %38 : vector<6x24x1xi1> to vector<6x24x32xi1>
    %40 = vector.broadcast %cst_13 : f32 to vector<6x24x32xf32>
    %41 = arith.select %39, %15, %40 : vector<6x24x32xi1>, vector<6x24x32xf32>
    %42 = arith.truncf %41 : vector<6x24x32xf32> to vector<6x24x32xbf16>
    %cst_14 = arith.constant 0.000000e+00 : f32
    %43 = vector.broadcast %cst_14 : f32 to vector<64x32xf32>
    %44 = vector.extract_strided_slice %42 {offsets = [0, 0, 0], sizes = [4, 16, 32], strides = [1, 1, 1]} : vector<6x24x32xbf16> to vector<4x16x32xbf16>
    %45 = vector.shape_cast %44 : vector<4x16x32xbf16> to vector<64x32xbf16>
    %c0_15 = arith.constant 0 : index
    %c0_16 = arith.constant 0 : index
    %c0_17 = arith.constant 0 : index
    %46 = vector.load %arg4[%c0_15, %c0_16, %c0_17] : memref<9x32x32xbf16, #tpu.memory_space<vmem>>, vector<1x32x32xbf16>
    %47 = vector.shape_cast %46 : vector<1x32x32xbf16> to vector<32x32xbf16>
    %cst_18 = arith.constant dense<0.000000e+00> : vector<64x32xf32>
    %48 = tpu.matmul %45, %47, %cst_18 {dimension_numbers = #tpu.dot_dimension_numbers<[1], [0], [0], [1], [0, 0, 1, 1], [], []>} : vector<64x32xbf16>, vector<32x32xbf16>, vector<64x32xf32> -> vector<64x32xf32>
    %49 = arith.addf %43, %48 : vector<64x32xf32>
    %50 = vector.extract_strided_slice %42 {offsets = [0, 1, 0], sizes = [4, 16, 32], strides = [1, 1, 1]} : vector<6x24x32xbf16> to vector<4x16x32xbf16>
    %51 = vector.shape_cast %50 : vector<4x16x32xbf16> to vector<64x32xbf16>
    %c1 = arith.constant 1 : index
    %c0_19 = arith.constant 0 : index
    %c0_20 = arith.constant 0 : index
    %52 = vector.load %arg4[%c1, %c0_19, %c0_20] : memref<9x32x32xbf16, #tpu.memory_space<vmem>>, vector<1x32x32xbf16>
    %53 = vector.shape_cast %52 : vector<1x32x32xbf16> to vector<32x32xbf16>
    %cst_21 = arith.constant dense<0.000000e+00> : vector<64x32xf32>
    %54 = tpu.matmul %51, %53, %cst_21 {dimension_numbers = #tpu.dot_dimension_numbers<[1], [0], [0], [1], [0, 0, 1, 1], [], []>} : vector<64x32xbf16>, vector<32x32xbf16>, vector<64x32xf32> -> vector<64x32xf32>
    %55 = arith.addf %49, %54 : vector<64x32xf32>
    %56 = vector.extract_strided_slice %42 {offsets = [0, 2, 0], sizes = [4, 16, 32], strides = [1, 1, 1]} : vector<6x24x32xbf16> to vector<4x16x32xbf16>
    %57 = vector.shape_cast %56 : vector<4x16x32xbf16> to vector<64x32xbf16>
    %c2 = arith.constant 2 : index
    %c0_22 = arith.constant 0 : index
    %c0_23 = arith.constant 0 : index
    %58 = vector.load %arg4[%c2, %c0_22, %c0_23] : memref<9x32x32xbf16, #tpu.memory_space<vmem>>, vector<1x32x32xbf16>
    %59 = vector.shape_cast %58 : vector<1x32x32xbf16> to vector<32x32xbf16>
    %cst_24 = arith.constant dense<0.000000e+00> : vector<64x32xf32>
    %60 = tpu.matmul %57, %59, %cst_24 {dimension_numbers = #tpu.dot_dimension_numbers<[1], [0], [0], [1], [0, 0, 1, 1], [], []>} : vector<64x32xbf16>, vector<32x32xbf16>, vector<64x32xf32> -> vector<64x32xf32>
    %61 = arith.addf %55, %60 : vector<64x32xf32>
    %62 = vector.extract_strided_slice %42 {offsets = [1, 0, 0], sizes = [4, 16, 32], strides = [1, 1, 1]} : vector<6x24x32xbf16> to vector<4x16x32xbf16>
    %63 = vector.shape_cast %62 : vector<4x16x32xbf16> to vector<64x32xbf16>
    %c3 = arith.constant 3 : index
    %c0_25 = arith.constant 0 : index
    %c0_26 = arith.constant 0 : index
    %64 = vector.load %arg4[%c3, %c0_25, %c0_26] : memref<9x32x32xbf16, #tpu.memory_space<vmem>>, vector<1x32x32xbf16>
    %65 = vector.shape_cast %64 : vector<1x32x32xbf16> to vector<32x32xbf16>
    %cst_27 = arith.constant dense<0.000000e+00> : vector<64x32xf32>
    %66 = tpu.matmul %63, %65, %cst_27 {dimension_numbers = #tpu.dot_dimension_numbers<[1], [0], [0], [1], [0, 0, 1, 1], [], []>} : vector<64x32xbf16>, vector<32x32xbf16>, vector<64x32xf32> -> vector<64x32xf32>
    %67 = arith.addf %61, %66 : vector<64x32xf32>
    %68 = vector.extract_strided_slice %42 {offsets = [1, 1, 0], sizes = [4, 16, 32], strides = [1, 1, 1]} : vector<6x24x32xbf16> to vector<4x16x32xbf16>
    %69 = vector.shape_cast %68 : vector<4x16x32xbf16> to vector<64x32xbf16>
    %c4 = arith.constant 4 : index
    %c0_28 = arith.constant 0 : index
    %c0_29 = arith.constant 0 : index
    %70 = vector.load %arg4[%c4, %c0_28, %c0_29] : memref<9x32x32xbf16, #tpu.memory_space<vmem>>, vector<1x32x32xbf16>
    %71 = vector.shape_cast %70 : vector<1x32x32xbf16> to vector<32x32xbf16>
    %cst_30 = arith.constant dense<0.000000e+00> : vector<64x32xf32>
    %72 = tpu.matmul %69, %71, %cst_30 {dimension_numbers = #tpu.dot_dimension_numbers<[1], [0], [0], [1], [0, 0, 1, 1], [], []>} : vector<64x32xbf16>, vector<32x32xbf16>, vector<64x32xf32> -> vector<64x32xf32>
    %73 = arith.addf %67, %72 : vector<64x32xf32>
    %74 = vector.extract_strided_slice %42 {offsets = [1, 2, 0], sizes = [4, 16, 32], strides = [1, 1, 1]} : vector<6x24x32xbf16> to vector<4x16x32xbf16>
    %75 = vector.shape_cast %74 : vector<4x16x32xbf16> to vector<64x32xbf16>
    %c5 = arith.constant 5 : index
    %c0_31 = arith.constant 0 : index
    %c0_32 = arith.constant 0 : index
    %76 = vector.load %arg4[%c5, %c0_31, %c0_32] : memref<9x32x32xbf16, #tpu.memory_space<vmem>>, vector<1x32x32xbf16>
    %77 = vector.shape_cast %76 : vector<1x32x32xbf16> to vector<32x32xbf16>
    %cst_33 = arith.constant dense<0.000000e+00> : vector<64x32xf32>
    %78 = tpu.matmul %75, %77, %cst_33 {dimension_numbers = #tpu.dot_dimension_numbers<[1], [0], [0], [1], [0, 0, 1, 1], [], []>} : vector<64x32xbf16>, vector<32x32xbf16>, vector<64x32xf32> -> vector<64x32xf32>
    %79 = arith.addf %73, %78 : vector<64x32xf32>
    %80 = vector.extract_strided_slice %42 {offsets = [2, 0, 0], sizes = [4, 16, 32], strides = [1, 1, 1]} : vector<6x24x32xbf16> to vector<4x16x32xbf16>
    %81 = vector.shape_cast %80 : vector<4x16x32xbf16> to vector<64x32xbf16>
    %c6 = arith.constant 6 : index
    %c0_34 = arith.constant 0 : index
    %c0_35 = arith.constant 0 : index
    %82 = vector.load %arg4[%c6, %c0_34, %c0_35] : memref<9x32x32xbf16, #tpu.memory_space<vmem>>, vector<1x32x32xbf16>
    %83 = vector.shape_cast %82 : vector<1x32x32xbf16> to vector<32x32xbf16>
    %cst_36 = arith.constant dense<0.000000e+00> : vector<64x32xf32>
    %84 = tpu.matmul %81, %83, %cst_36 {dimension_numbers = #tpu.dot_dimension_numbers<[1], [0], [0], [1], [0, 0, 1, 1], [], []>} : vector<64x32xbf16>, vector<32x32xbf16>, vector<64x32xf32> -> vector<64x32xf32>
    %85 = arith.addf %79, %84 : vector<64x32xf32>
    %86 = vector.extract_strided_slice %42 {offsets = [2, 1, 0], sizes = [4, 16, 32], strides = [1, 1, 1]} : vector<6x24x32xbf16> to vector<4x16x32xbf16>
    %87 = vector.shape_cast %86 : vector<4x16x32xbf16> to vector<64x32xbf16>
    %c7 = arith.constant 7 : index
    %c0_37 = arith.constant 0 : index
    %c0_38 = arith.constant 0 : index
    %88 = vector.load %arg4[%c7, %c0_37, %c0_38] : memref<9x32x32xbf16, #tpu.memory_space<vmem>>, vector<1x32x32xbf16>
    %89 = vector.shape_cast %88 : vector<1x32x32xbf16> to vector<32x32xbf16>
    %cst_39 = arith.constant dense<0.000000e+00> : vector<64x32xf32>
    %90 = tpu.matmul %87, %89, %cst_39 {dimension_numbers = #tpu.dot_dimension_numbers<[1], [0], [0], [1], [0, 0, 1, 1], [], []>} : vector<64x32xbf16>, vector<32x32xbf16>, vector<64x32xf32> -> vector<64x32xf32>
    %91 = arith.addf %85, %90 : vector<64x32xf32>
    %92 = vector.extract_strided_slice %42 {offsets = [2, 2, 0], sizes = [4, 16, 32], strides = [1, 1, 1]} : vector<6x24x32xbf16> to vector<4x16x32xbf16>
    %93 = vector.shape_cast %92 : vector<4x16x32xbf16> to vector<64x32xbf16>
    %c8 = arith.constant 8 : index
    %c0_40 = arith.constant 0 : index
    %c0_41 = arith.constant 0 : index
    %94 = vector.load %arg4[%c8, %c0_40, %c0_41] : memref<9x32x32xbf16, #tpu.memory_space<vmem>>, vector<1x32x32xbf16>
    %95 = vector.shape_cast %94 : vector<1x32x32xbf16> to vector<32x32xbf16>
    %cst_42 = arith.constant dense<0.000000e+00> : vector<64x32xf32>
    %96 = tpu.matmul %93, %95, %cst_42 {dimension_numbers = #tpu.dot_dimension_numbers<[1], [0], [0], [1], [0, 0, 1, 1], [], []>} : vector<64x32xbf16>, vector<32x32xbf16>, vector<64x32xf32> -> vector<64x32xf32>
    %97 = arith.addf %91, %96 : vector<64x32xf32>
    %c0_43 = arith.constant 0 : index
    %c0_44 = arith.constant 0 : index
    %98 = vector.load %arg5[%c0_43, %c0_44] : memref<1x32xf32, #tpu.memory_space<vmem>>, vector<1x32xf32>
    %99 = vector.broadcast %98 : vector<1x32xf32> to vector<64x32xf32>
    %100 = arith.addf %97, %99 : vector<64x32xf32>
    %cst_45 = arith.constant 0.000000e+00 : f32
    %101 = vector.broadcast %cst_45 : f32 to vector<64x32xf32>
    %102 = arith.maximumf %100, %101 : vector<64x32xf32>
    %103 = arith.truncf %102 : vector<64x32xf32> to vector<64x32xbf16>
    %104 = vector.extract_strided_slice %6 {offsets = [1, 1, 0], sizes = [4, 16, 128], strides = [1, 1, 1]} : vector<6x24x128xbf16> to vector<4x16x128xbf16>
    %105 = vector.shape_cast %104 : vector<4x16x128xbf16> to vector<64x128xbf16>
    %106 = arith.extf %105 : vector<64x128xbf16> to vector<64x128xf32>
    %c0_46 = arith.constant 0 : index
    %c0_47 = arith.constant 0 : index
    %107 = vector.load %arg6[%c0_46, %c0_47] : memref<32x128xbf16, #tpu.memory_space<vmem>>, vector<32x128xbf16>
    %cst_48 = arith.constant dense<0.000000e+00> : vector<64x128xf32>
    %108 = tpu.matmul %103, %107, %cst_48 {dimension_numbers = #tpu.dot_dimension_numbers<[1], [0], [0], [1], [0, 0, 1, 1], [], []>} : vector<64x32xbf16>, vector<32x128xbf16>, vector<64x128xf32> -> vector<64x128xf32>
    %c0_49 = arith.constant 0 : index
    %c0_50 = arith.constant 0 : index
    %109 = vector.load %arg7[%c0_49, %c0_50] : memref<1x128xf32, #tpu.memory_space<vmem>>, vector<1x128xf32>
    %110 = vector.broadcast %109 : vector<1x128xf32> to vector<64x128xf32>
    %111 = arith.addf %108, %110 : vector<64x128xf32>
    %112 = arith.addf %111, %106 : vector<64x128xf32>
    %cst_51 = arith.constant 0.000000e+00 : f32
    %113 = vector.broadcast %cst_51 : f32 to vector<64x128xf32>
    %114 = arith.maximumf %112, %113 : vector<64x128xf32>
    %115 = vector.shape_cast %114 : vector<64x128xf32> to vector<1x4x16x128xf32>
    %116 = arith.truncf %115 : vector<1x4x16x128xf32> to vector<1x4x16x128xbf16>
    %c0_52 = arith.constant 0 : index
    %c0_53 = arith.constant 0 : index
    %c0_54 = arith.constant 0 : index
    %c0_55 = arith.constant 0 : index
    %117 = vector.load %arg9[%c0_52, %c0_53, %c0_54, %c0_55] : memref<1x4x16x128xbf16, #tpu.memory_space<vmem>>, vector<1x4x16x128xbf16>
    tpu.vector_store %arg9[%c0_52, %c0_53, %c0_54, %c0_55], %116 {strides = array<i32>} : memref<1x4x16x128xbf16, #tpu.memory_space<vmem>>, vector<1x4x16x128xbf16>,
    return
  }
  func.func @transform_0(%arg0: i32, %arg1: i32) -> (i32, i32) {
    %c0_i32 = arith.constant 0 : i32
    %c0_i32_0 = arith.constant 0 : i32
    %c0_i32_1 = arith.constant 0 : i32
    return %c0_i32, %c0_i32_0 : i32, i32
  }
  func.func @transform_1(%arg0: i32, %arg1: i32) -> (i32, i32) {
    %c0_i32 = arith.constant 0 : i32
    %c0_i32_0 = arith.constant 0 : i32
    %c0_i32_1 = arith.constant 0 : i32
    return %c0_i32, %c0_i32_0 : i32, i32
  }
  func.func @transform_2(%arg0: i32, %arg1: i32) -> (i32, i32, i32) {
    %c0_i32 = arith.constant 0 : i32
    %c0_i32_0 = arith.constant 0 : i32
    %c0_i32_1 = arith.constant 0 : i32
    %c0_i32_2 = arith.constant 0 : i32
    return %c0_i32, %c0_i32_0, %c0_i32_1 : i32, i32, i32
  }
  func.func @transform_3(%arg0: i32, %arg1: i32) -> (i32, i32) {
    %c0_i32 = arith.constant 0 : i32
    %c0_i32_0 = arith.constant 0 : i32
    %c0_i32_1 = arith.constant 0 : i32
    return %c0_i32, %c0_i32_0 : i32, i32
  }
  func.func @transform_4(%arg0: i32, %arg1: i32) -> (i32, i32) {
    %c0_i32 = arith.constant 0 : i32
    %c0_i32_0 = arith.constant 0 : i32
    %c0_i32_1 = arith.constant 0 : i32
    return %c0_i32, %c0_i32_0 : i32, i32
  }
  func.func @transform_5(%arg0: i32, %arg1: i32) -> (i32, i32) {
    %c0_i32 = arith.constant 0 : i32
    %c0_i32_0 = arith.constant 0 : i32
    %c0_i32_1 = arith.constant 0 : i32
    return %c0_i32, %c0_i32_0 : i32, i32
  }
  func.func @transform_7(%arg0: i32, %arg1: i32) -> (i32, i32, i32, i32) {
    %c0_i32 = arith.constant 0 : i32
    %c0_i32_0 = arith.constant 0 : i32
    %c0_i32_1 = arith.constant 0 : i32
    return %arg0, %arg1, %c0_i32, %c0_i32_0 : i32, i32, i32, i32
  }
}

</mosaic_0001>

<llo_original>
// kernel: tpu_custom_call.1
$region0: #{tpu_custom_call.1}
  #allocation0 [shape = 'u32[]', space=smem, size = 0x4, offset = 0x4, fixed_abs, tag = 'smem constant byte address 0x4 - core index']
  #allocation1 [shape = 'u32[72,128]{1,0:T(1,128)}', space=vmem, size = 0x9000, scoped, tag = 'internal scratch']
  #allocation2 [shape = 'bf16[6,24,128]{2,1,0:T(8,128)(2,1)}', space=vmem, size = 0x9000, scoped, tag = 'scratch operand']
  #allocation3 [shape = 's32[1]{0}', space=sflag, size = 0x4, scoped, tag = 'scratch operand']
  #allocation8 [shape = 's32[]', space=sflag, size = 0x4, offset = 0, fixed_abs, tag = 'sflag constant byte address 0x0 - dummy sync flag']
  #allocation9 [shape = 's32[]', space=sflag, size = 0x4, offset = 0, fixed_abs, tag = 'sflag constant byte address 0x0 - dummy sync flag']
  #allocation10 [shape = 'u32[]', space=smem, size = 0x4, offset = 0x44, fixed_abs, tag = 'smem constant byte address 0x44 - assertion arg 0']
  #allocation11 [shape = 'u32[]', space=smem, size = 0x4, offset = 0x48, fixed_abs, tag = 'smem constant byte address 0x48 - assertion arg 1']
  %s0 = inlined_call_operand.vmem [shape: bf16[128,32], index: 0, kind: input, shape index: {}]
  %s1 = inlined_call_operand.vmem [shape: f32[1,32], index: 1, kind: input, shape index: {}]
  %s2 = inlined_call_operand.hbm [shape: bf16[9,32,32], index: 2, kind: input, shape index: {}]
  %s3 = inlined_call_operand.vmem [shape: f32[1,32], index: 3, kind: input, shape index: {}]
  %s4 = inlined_call_operand.vmem [shape: bf16[32,128], index: 4, kind: input, shape index: {}]
  %s5 = inlined_call_operand.vmem [shape: f32[1,128], index: 5, kind: input, shape index: {}]
  %s6 = inlined_call_operand.hbm [shape: bf16[2,18,24,128], index: 6, kind: input, shape index: {}]
  %s7 = inlined_call_operand.hbm [shape: bf16[2,16,16,128], index: 7, kind: output, shape index: {}]
  %s8 = sld [smem:[#allocation0]]
  $region65: #{tpu_custom_call.1} parent=0
    _
  %s10 = ssub.s32 1, %s8
  %s11 = scalar_select 0, %s10, %s8
  $region1: #{tpu_custom_call.1} parent=0
    #allocation4 [shape = 'u8[73728]{0}', space=vmem, size = 0x12000, scoped, tag = 'input window, operand 2, single buffered']
    #allocation5 [shape = 's32[2]{0}', space=sflag, size = 0x8, scoped, tag = 'scoped memory for tpu_custom_call.1']
    #allocation6 [shape = 's32[2]{0}', space=sflag, size = 0x8, scoped, tag = 'scoped memory for tpu_custom_call.1']
    #allocation7 [shape = 'u8[32768]{0}', space=vmem, size = 0x8000, scoped, tag = 'output window, operand 0']
    %12 = vsyncpa [#allocation5], 0
    %13 = vsyncpa [#allocation6], 0
    %s14 = scalar_lea.sflag [#allocation6], 1
    %15 = vsyncpa %s14, 0
    loop: start=0, step=1, limit=10
    $region2: #{tpu_custom_call.1} parent=1 // loop_pre_header
      _
    $region3: #{tpu_custom_call.1} parent=1 // loop_header
      %s17 = sphi 0, %s21
      %p18 = scmp.ge.s32.totalorder %s17, 10
      %s24 = sphi 0, %s36
      %s25 = sphi 0, %s32
      %s26 = sphi 0, %s24
      %s27 = sphi 0, %s25
      %s28 = sphi 0, %s26
      %s29 = sphi 0, %s27
      %s37 = sphi 0, %s37
      %s39 = sphi 0, %s37
      %s40 = sphi 0, %s39
      %s54 = sphi 0, %s40
      %s58 = sphi 0, %s58
      %s60 = sphi 0, %s58
      %s61 = sphi 0, %s60
      %s75 = sphi 0, %s61
      %s79 = sphi 0, %s79
      %s81 = sphi 0, %s79
      %s82 = sphi 0, %s81
      %s96 = sphi 0, %s82
      %s100 = sphi 0, %s100
      %s102 = sphi 0, %s100
      %s103 = sphi 0, %s102
      %s117 = sphi 0, %s103
      %s121 = sphi 0, %s121
      %s123 = sphi 0, %s121
      %s124 = sphi 0, %s123
      %s138 = sphi 0, %s124
      %s142 = sphi 0, %s142
      %s144 = sphi 0, %s142
      %s145 = sphi 0, %s144
      %s159 = sphi 0, %s145
      %s167 = sphi 0, %s169
      %s170 = sphi 0, %s167
      %s171 = sphi 0, %s170
      %s187 = sphi 0, %s171
    $region4: #{tpu_custom_call.1} parent=1 // loop_header_branch
      %20 = sbr.rel (%p18) target = $region8
    $region5: #{tpu_custom_call.1} parent=1 // loop_body
      %s22 = ssub.s32 %s17, 1
      %s23 = ssub.s32 %s17, 2
      %s30 = sadd.s32 1, %s25
      %p31 = scmp.ge.s32.totalorder %s30, 4
      %s32 = scalar_select %p31, 0, %s30
      %s33 = sadd.s32 1, %s24
      %s34 = scalar_select %p31, %s33, %s24
      %p35 = scmp.ge.s32.totalorder %s34, 2
      %s36 = scalar_select %p35, 0, %s34
      %s38 = sadd.s32 %s37, 1
      %p41 = scmp.eq.s32.totalorder %s17, 7
      %p42 = scmp.ne.s32.totalorder %s37, %s39
      %p43 = scmp.eq.s32.totalorder %s17, 0
      %p44 = por %p42, %p43
      %p45 = scmp.ne.s32.totalorder %s37, %s39
      %p46 = scmp.eq.s32.totalorder %s22, 7
      %p47 = por %p45, %p46
      %p48 = scmp.ne.s32.totalorder %s39, %s40
      %p49 = scmp.eq.s32.totalorder %s22, 0
      %p50 = por %p48, %p49
      %p51 = scmp.ne.s32.totalorder %s39, %s40
      %p52 = scmp.eq.s32.totalorder %s23, 7
      %p53 = por %p51, %p52
      %p55 = scmp.ne.s32.totalorder %s40, %s54
      %p56 = scmp.eq.s32.totalorder %s23, 0
      %p57 = por %p55, %p56
      %s59 = sadd.s32 %s58, 1
      %p62 = scmp.eq.s32.totalorder %s17, 7
      %p63 = scmp.ne.s32.totalorder %s58, %s60
      %p64 = scmp.eq.s32.totalorder %s17, 0
      %p65 = por %p63, %p64
      %p66 = scmp.ne.s32.totalorder %s58, %s60
      %p67 = scmp.eq.s32.totalorder %s22, 7
      %p68 = por %p66, %p67
      %p69 = scmp.ne.s32.totalorder %s60, %s61
      %p70 = scmp.eq.s32.totalorder %s22, 0
      %p71 = por %p69, %p70
      %p72 = scmp.ne.s32.totalorder %s60, %s61
      %p73 = scmp.eq.s32.totalorder %s23, 7
      %p74 = por %p72, %p73
      %p76 = scmp.ne.s32.totalorder %s61, %s75
      %p77 = scmp.eq.s32.totalorder %s23, 0
      %p78 = por %p76, %p77
      %s80 = sadd.s32 %s79, 1
      %p83 = scmp.eq.s32.totalorder %s17, 7
      %p84 = scmp.ne.s32.totalorder %s79, %s81
      %p85 = scmp.eq.s32.totalorder %s17, 0
      %p86 = por %p84, %p85
      %p87 = scmp.ne.s32.totalorder %s79, %s81
      %p88 = scmp.eq.s32.totalorder %s22, 7
      %p89 = por %p87, %p88
      %p90 = scmp.ne.s32.totalorder %s81, %s82
      %p91 = scmp.eq.s32.totalorder %s22, 0
      %p92 = por %p90, %p91
      %p93 = scmp.ne.s32.totalorder %s81, %s82
      %p94 = scmp.eq.s32.totalorder %s23, 7
      %p95 = por %p93, %p94
      %p97 = scmp.ne.s32.totalorder %s82, %s96
      %p98 = scmp.eq.s32.totalorder %s23, 0
      %p99 = por %p97, %p98
      %s101 = sadd.s32 %s100, 1
      %p104 = scmp.eq.s32.totalorder %s17, 7
      %p105 = scmp.ne.s32.totalorder %s100, %s102
      %p106 = scmp.eq.s32.totalorder %s17, 0
      %p107 = por %p105, %p106
      %p108 = scmp.ne.s32.totalorder %s100, %s102
      %p109 = scmp.eq.s32.totalorder %s22, 7
      %p110 = por %p108, %p109
      %p111 = scmp.ne.s32.totalorder %s102, %s103
      %p112 = scmp.eq.s32.totalorder %s22, 0
      %p113 = por %p111, %p112
      %p114 = scmp.ne.s32.totalorder %s102, %s103
      %p115 = scmp.eq.s32.totalorder %s23, 7
      %p116 = por %p114, %p115
      %p118 = scmp.ne.s32.totalorder %s103, %s117
      %p119 = scmp.eq.s32.totalorder %s23, 0
      %p120 = por %p118, %p119
      %s122 = sadd.s32 %s121, 1
      %p125 = scmp.eq.s32.totalorder %s17, 7
      %p126 = scmp.ne.s32.totalorder %s121, %s123
      %p127 = scmp.eq.s32.totalorder %s17, 0
      %p128 = por %p126, %p127
      %p129 = scmp.ne.s32.totalorder %s121, %s123
      %p130 = scmp.eq.s32.totalorder %s22, 7
      %p131 = por %p129, %p130
      %p132 = scmp.ne.s32.totalorder %s123, %s124
      %p133 = scmp.eq.s32.totalorder %s22, 0
      %p134 = por %p132, %p133
      %p135 = scmp.ne.s32.totalorder %s123, %s124
      %p136 = scmp.eq.s32.totalorder %s23, 7
      %p137 = por %p135, %p136
      %p139 = scmp.ne.s32.totalorder %s124, %s138
      %p140 = scmp.eq.s32.totalorder %s23, 0
      %p141 = por %p139, %p140
      %s143 = sadd.s32 %s142, 1
      %p146 = scmp.eq.s32.totalorder %s17, 7
      %p147 = scmp.ne.s32.totalorder %s142, %s144
      %p148 = scmp.eq.s32.totalorder %s17, 0
      %p149 = por %p147, %p148
      %p150 = scmp.ne.s32.totalorder %s142, %s144
      %p151 = scmp.eq.s32.totalorder %s22, 7
      %p152 = por %p150, %p151
      %p153 = scmp.ne.s32.totalorder %s144, %s145
      %p154 = scmp.eq.s32.totalorder %s22, 0
      %p155 = por %p153, %p154
      %p156 = scmp.ne.s32.totalorder %s144, %s145
      %p157 = scmp.eq.s32.totalorder %s23, 7
      %p158 = por %p156, %p157
      %p160 = scmp.ne.s32.totalorder %s145, %s159
      %p161 = scmp.eq.s32.totalorder %s23, 0
      %p162 = por %p160, %p161
      %s163 = ssub.s32 %s24, %s36
      %s164 = ssub.s32 %s25, %s32
      %s165 = sor.u32 %s163, %s164
      %p166 = scmp.eq.s32.totalorder %s165, 0
      %s168 = sadd.s32 %s167, 1
      %s169 = scalar_select %p166, %s167, %s168
      %p172 = pneg %p166
      %p173 = scmp.eq.s32.totalorder %s17, 7
      %p174 = por %p172, %p173
      %p175 = scmp.ne.s32.totalorder %s167, %s170
      %p176 = scmp.eq.s32.totalorder %s17, 0
      %p177 = por %p175, %p176
      %p178 = scmp.ne.s32.totalorder %s167, %s170
      %p179 = scmp.eq.s32.totalorder %s22, 7
      %p180 = por %p178, %p179
      %p181 = scmp.ne.s32.totalorder %s170, %s171
      %p182 = scmp.eq.s32.totalorder %s22, 0
      %p183 = por %p181, %p182
      %p184 = scmp.ne.s32.totalorder %s170, %s171
      %p185 = scmp.eq.s32.totalorder %s23, 7
      %p186 = por %p184, %p185
      %p188 = scmp.ne.s32.totalorder %s171, %s187
      %p189 = scmp.eq.s32.totalorder %s23, 0
      %p190 = por %p188, %p189
      %p191 = scmp.le.s32.totalorder 1, %s17
      %p192 = scmp.lt.s32.totalorder %s17, 9
      %p193 = pnand %p191, %p192
      %p194 = pneg %p193
      // Predicated region
      $region9: #{tpu_custom_call.1} parent=5 // pred_check
        _
      $region10: #{tpu_custom_call.1} parent=5 // pred_check_branch
        %196 = sbr.rel (%p193) target = $region12
      $region11: #{tpu_custom_call.1} parent=5 // pred_region
        %s197 = ssub.s32 %s17, 1
        // Predicated region
        $region13: #{tpu_custom_call.1} parent=11 // pred_check
          %p198 = pneg %p50
        $region14: #{tpu_custom_call.1} parent=11 // pred_check_branch
          %200 = sbr.rel (%p198) target = $region16
        $region15: #{tpu_custom_call.1} parent=11 // pred_region
          _
        $region16: #{tpu_custom_call.1} parent=11 // pred_fallthru
          _
        // Predicated region
        $region17: #{tpu_custom_call.1} parent=11 // pred_check
          %p201 = pneg %p71
        $region18: #{tpu_custom_call.1} parent=11 // pred_check_branch
          %203 = sbr.rel (%p201) target = $region20
        $region19: #{tpu_custom_call.1} parent=11 // pred_region
          _
        $region20: #{tpu_custom_call.1} parent=11 // pred_fallthru
          _
        // Predicated region
        $region21: #{tpu_custom_call.1} parent=11 // pred_check
          %p204 = pneg %p92
        $region22: #{tpu_custom_call.1} parent=11 // pred_check_branch
          %206 = sbr.rel (%p204) target = $region24
        $region23: #{tpu_custom_call.1} parent=11 // pred_region
          %208 = vsyncadd [#allocation5], 0
          %s209 = sshll.u32 %s2, 4
          %s210 = int_to_ptr.hbm [resolvable:$true] %s209
          %s211 = sshll.u32 [#allocation4], 4
          %s212 = int_to_ptr.vmem [resolvable:$true] %s211
          %217 = dma.hbm_to_vmem [thread:$0]  %s210, 2304, %s212, [#allocation5], 64, 64, 4
        $region24: #{tpu_custom_call.1} parent=11 // pred_fallthru
          _
        // Predicated region
        $region25: #{tpu_custom_call.1} parent=11 // pred_check
          %p218 = pneg %p113
        $region26: #{tpu_custom_call.1} parent=11 // pred_check_branch
          %220 = sbr.rel (%p218) target = $region28
        $region27: #{tpu_custom_call.1} parent=11 // pred_region
          _
        $region28: #{tpu_custom_call.1} parent=11 // pred_fallthru
          _
        // Predicated region
        $region29: #{tpu_custom_call.1} parent=11 // pred_check
          %p221 = pneg %p134
        $region30: #{tpu_custom_call.1} parent=11 // pred_check_branch
          %223 = sbr.rel (%p221) target = $region32
        $region31: #{tpu_custom_call.1} parent=11 // pred_region
          _
        $region32: #{tpu_custom_call.1} parent=11 // pred_fallthru
          _
        // Predicated region
        $region33: #{tpu_custom_call.1} parent=11 // pred_check
          %p224 = pneg %p155
        $region34: #{tpu_custom_call.1} parent=11 // pred_check_branch
          %226 = sbr.rel (%p224) target = $region36
        $region35: #{tpu_custom_call.1} parent=11 // pred_region
          _
        $region36: #{tpu_custom_call.1} parent=11 // pred_fallthru
          _
      $region12: #{tpu_custom_call.1} parent=5 // pred_fallthru
        _
      %p227 = scmp.lt.s32.totalorder %s17, 8
      // Predicated region
      $region37: #{tpu_custom_call.1} parent=5 // pred_check
        %p228 = pneg %p227
      $region38: #{tpu_custom_call.1} parent=5 // pred_check_branch
        %230 = sbr.rel (%p228) target = $region40
      $region39: #{tpu_custom_call.1} parent=5 // pred_region
        _
      $region40: #{tpu_custom_call.1} parent=5 // pred_fallthru
        _
      %p231 = scmp.le.s32.totalorder 1, %s17
      %p232 = scmp.lt.s32.totalorder %s17, 9
      %p233 = pnand %p231, %p232
      %p234 = pneg %p233
      // Predicated region
      $region41: #{tpu_custom_call.1} parent=5 // pred_check
        _
      $region42: #{tpu_custom_call.1} parent=5 // pred_check_branch
        %236 = sbr.rel (%p233) target = $region44
      $region43: #{tpu_custom_call.1} parent=5 // pred_region
        %s237 = ssub.s32 %s17, 1
        // Predicated region
        $region45: #{tpu_custom_call.1} parent=43 // pred_check
          %p238 = pneg %p92
        $region46: #{tpu_custom_call.1} parent=43 // pred_check_branch
          %240 = sbr.rel (%p238) target = $region48
        $region47: #{tpu_custom_call.1} parent=43 // pred_region
          %242 = dma.done [#allocation5], 2304
        $region48: #{tpu_custom_call.1} parent=43 // pred_fallthru
          _
        %p243 = pneg %p50
        %p244 = pneg %p47
        %p245 = pneg %p71
        %p246 = pneg %p68
        %p247 = pneg %p92
        %p248 = pneg %p89
        %p249 = pneg %p113
        %p250 = pneg %p110
        %p251 = pneg %p134
        %p252 = pneg %p131
        %p253 = pneg %p155
        %p254 = pneg %p152
        %p255 = pneg %p183
        %p256 = pneg %p180
        %s257 = sand.u32 %s170, 1
        %s258 = scalar_lea.sflag [#allocation6], %s257
        %s259 = sand.u32 %s170, 1
        %s260 = smul.addr %s259, 32
        %s261 = scalar_lea.vmem [#allocation7], %s260
        %s262 = smul.u32 4, %s27
        %s264 = smul.u32 %s27, 4
        %s265 = smul.u32 %s264, 3
        %s266 = smul.u32 %s26, 54
        %s267 = sadd.s32 %s265, %s266
        %s268 = smul.addr %s267, 4
        %s269 = scalar_lea.hbm %s6, %s268
        // Predicated region
        $region49: #{tpu_custom_call.1} parent=43 // pred_check
          _
        $region50: #{tpu_custom_call.1} parent=43 // pred_check_branch
          %271 = sbr.rel target = $region52
        $region51: #{tpu_custom_call.1} parent=43 // pred_region
          %272 = sst [smem:[#allocation10]] [#allocation9]
          %273 = sst [smem:[#allocation11]] [#allocation8]
        $region52: #{tpu_custom_call.1} parent=43 // pred_fallthru
          _
        %275 = shalt.err (0)
        %s277 = sshll.u32 %s269, 4
        %s278 = int_to_ptr.hbm [resolvable:$true] %s277
        %s279 = sshll.u32 [#allocation2], 4
        %s280 = int_to_ptr.vmem [resolvable:$true] %s279
        %282 = dma.hbm_to_vmem [thread:$0]  %s278, 1152, %s280, [#allocation3]
        %s283 = smul.u32 4, 6
        %s284 = smul.u32 %s283, 3
        %s285 = smul.u32 %s284, 1
        %s286 = sshll.u32 %s285, 4
        %287 = dma.done [#allocation3], %s286
        %v288 = vld [vmem:[#allocation2] sm:$0xf]
        %v289 = vld [vmem:[#allocation2 + $0x4] sm:$0xf]
        %v290 = vld [vmem:[#allocation2 + $0x8] sm:$0xf]
        %v291 = vld [vmem:[#allocation2 + $0xc] sm:$0xf]
        %v292 = vld [vmem:[#allocation2 + $0x10] sm:$0xf]
        %v293 = vld [vmem:[#allocation2 + $0x14] sm:$0xf]
        %v294 = vld [vmem:[#allocation2 + $0x18] sm:$0xf]
        %v295 = vld [vmem:[#allocation2 + $0x1c] sm:$0xf]
        %v296 = vld [vmem:[#allocation2 + $0x20] sm:$0xf]
        %v297 = vld [vmem:[#allocation2 + $0x24] sm:$0xf]
        %v298 = vld [vmem:[#allocation2 + $0x28] sm:$0xf]
        %v299 = vld [vmem:[#allocation2 + $0x2c] sm:$0xf]
        %v300 = vld [vmem:[#allocation2 + $0x30] sm:$0xf]
        %v301 = vld [vmem:[#allocation2 + $0x34] sm:$0xf]
        %v302 = vld [vmem:[#allocation2 + $0x38] sm:$0xf]
        %v303 = vld [vmem:[#allocation2 + $0x3c] sm:$0xf]
        %v304 = vld [vmem:[#allocation2 + $0x40] sm:$0xf]
        %v305 = vld [vmem:[#allocation2 + $0x44] sm:$0xf]
        %v306 = vld [vmem:[%s0] sm:$0xf]
        %v307 = vld [vmem:[%s0 + $0x4] sm:$0xf]
        %v308 = vld [vmem:[%s0 + $0x8] sm:$0xf]
        %v309 = vld [vmem:[%s0 + $0xc] sm:$0xf]
        %v310 = vld [vmem:[%s0 + $0x10] sm:$0xf]
        %v311 = vld [vmem:[%s0 + $0x14] sm:$0xf]
        %v312 = vld [vmem:[%s0 + $0x18] sm:$0xf]
        %v313 = vld [vmem:[%s0 + $0x1c] sm:$0xf]
        %v314 = vld [vmem:[%s0 + $0x20] sm:$0xf]
        %v315 = vld [vmem:[%s0 + $0x24] sm:$0xf]
        %v316 = vld [vmem:[%s0 + $0x28] sm:$0xf]
        %v317 = vld [vmem:[%s0 + $0x2c] sm:$0xf]
        %v318 = vld [vmem:[%s0 + $0x30] sm:$0xf]
        %v319 = vld [vmem:[%s0 + $0x34] sm:$0xf]
        %v320 = vld [vmem:[%s0 + $0x38] sm:$0xf]
        %v321 = vld [vmem:[%s0 + $0x3c] sm:$0xf]
        %v322 = vld [vmem:[%s1] sm:$0x1]
        %v324 = vperm.slane %v322, 0
        %v344 = vunpack.c.l.b16 %v288
        %v345 = vunpack.c.l.b16 %v289
        %v346 = vunpack.c.l.b16 %v290
        %v347 = vunpack.c.l.b16 %v291
        %v348 = vunpack.c.l.b16 %v292
        %v349 = vunpack.c.l.b16 %v293
        %v350 = vunpack.c.l.b16 %v294
        %v351 = vunpack.c.l.b16 %v295
        %v352 = vunpack.c.l.b16 %v296
        %v353 = vunpack.c.l.b16 %v297
        %v354 = vunpack.c.l.b16 %v298
        %v355 = vunpack.c.l.b16 %v299
        %v356 = vunpack.c.l.b16 %v300
        %v357 = vunpack.c.l.b16 %v301
        %v358 = vunpack.c.l.b16 %v302
        %v359 = vunpack.c.l.b16 %v303
        %v360 = vunpack.c.l.b16 %v304
        %v361 = vunpack.c.l.b16 %v305
        %v362 = vpack.c.b16 %v345, %v344
        %v363 = vpack.c.b16 %v347, %v346
        %v364 = vpack.c.b16 %v349, %v348
        %v365 = vpack.c.b16 %v351, %v350
        %v366 = vpack.c.b16 %v353, %v352
        %v367 = vpack.c.b16 %v355, %v354
        %v368 = vpack.c.b16 %v357, %v356
        %v369 = vpack.c.b16 %v359, %v358
        %v370 = vpack.c.b16 %v361, %v360
        %v396 = vunpack.c.l.b16 %v306
        %v397 = vunpack.c.l.b16 %v307
        %v398 = vunpack.c.l.b16 %v308
        %v399 = vunpack.c.l.b16 %v309
        %v400 = vunpack.c.l.b16 %v310
        %v401 = vunpack.c.l.b16 %v311
        %v402 = vunpack.c.l.b16 %v312
        %v403 = vunpack.c.l.b16 %v313
        %v404 = vunpack.c.l.b16 %v314
        %v405 = vunpack.c.l.b16 %v315
        %v406 = vunpack.c.l.b16 %v316
        %v407 = vunpack.c.l.b16 %v317
        %v408 = vunpack.c.l.b16 %v318
        %v409 = vunpack.c.l.b16 %v319
        %v410 = vunpack.c.l.b16 %v320
        %v411 = vunpack.c.l.b16 %v321
        %v412 = vpack.c.b16 %v397, %v396
        %v413 = vpack.c.b16 %v399, %v398
        %v414 = vpack.c.b16 %v401, %v400
        %v415 = vpack.c.b16 %v403, %v402
        %v416 = vpack.c.b16 %v405, %v404
        %v417 = vpack.c.b16 %v407, %v406
        %v418 = vpack.c.b16 %v409, %v408
        %v419 = vpack.c.b16 %v411, %v410
        %428 = vmatpush.bf16.msra.mxu0 %v419
        %429 = vmatpush.bf16.msra.mxu0 %v418
        %430 = vmatpush.bf16.msra.mxu0 %v417
        %431 = vmatpush.bf16.msra.mxu0 %v416
        %432 = vmatpush.bf16.msra.mxu0 %v415
        %433 = vmatpush.bf16.msra.mxu0 %v414
        %434 = vmatpush.bf16.msra.mxu0 %v413
        %435 = vmatpush.bf16.msra.mxu0 %v412
        %436 = vmatmul.bf16.gmra.mxu0 %v362
        %v437 = vpop.f32.mrf.mxu0
        %v438 = vadd.f32 %v324, %v437
        %v439 = vpop.f32.mrf.mxu0
        %v440 = vadd.f32 %v324, %v439
        %441 = vmatmul.bf16.gmra.mxu0 %v363
        %v442 = vpop.f32.mrf.mxu0
        %v443 = vadd.f32 %v324, %v442
        %v444 = vpop.f32.mrf.mxu0
        %v445 = vadd.f32 %v324, %v444
        %446 = vmatmul.bf16.gmra.mxu0 %v364
        %v447 = vpop.f32.mrf.mxu0
        %v448 = vadd.f32 %v324, %v447
        %v449 = vpop.f32.mrf.mxu0
        %v450 = vadd.f32 %v324, %v449
        %451 = vmatmul.bf16.gmra.mxu0 %v365
        %v452 = vpop.f32.mrf.mxu0
        %v453 = vadd.f32 %v324, %v452
        %v454 = vpop.f32.mrf.mxu0
        %v455 = vadd.f32 %v324, %v454
        %456 = vmatmul.bf16.gmra.mxu0 %v366
        %v457 = vpop.f32.mrf.mxu0
        %v458 = vadd.f32 %v324, %v457
        %v459 = vpop.f32.mrf.mxu0
        %v460 = vadd.f32 %v324, %v459
        %461 = vmatmul.bf16.gmra.mxu0 %v367
        %v462 = vpop.f32.mrf.mxu0
        %v463 = vadd.f32 %v324, %v462
        %v464 = vpop.f32.mrf.mxu0
        %v465 = vadd.f32 %v324, %v464
        %466 = vmatmul.bf16.gmra.mxu0 %v368
        %v467 = vpop.f32.mrf.mxu0
        %v468 = vadd.f32 %v324, %v467
        %v469 = vpop.f32.mrf.mxu0
        %v470 = vadd.f32 %v324, %v469
        %471 = vmatmul.bf16.gmra.mxu0 %v369
        %v472 = vpop.f32.mrf.mxu0
        %v473 = vadd.f32 %v324, %v472
        %v474 = vpop.f32.mrf.mxu0
        %v475 = vadd.f32 %v324, %v474
        %476 = vmatmul.bf16.gmra.mxu0 %v370
        %v477 = vpop.f32.mrf.mxu0
        %v478 = vadd.f32 %v324, %v477
        %v479 = vpop.f32.mrf.mxu0
        %v480 = vadd.f32 %v324, %v479
        %481 = vdwg.mxu0
        %v482 = vmax.f32 %v438, 0.0
        %v483 = vmax.f32 %v440, 0.0
        %v484 = vmax.f32 %v443, 0.0
        %v485 = vmax.f32 %v445, 0.0
        %v486 = vmax.f32 %v448, 0.0
        %v487 = vmax.f32 %v450, 0.0
        %v488 = vmax.f32 %v453, 0.0
        %v489 = vmax.f32 %v455, 0.0
        %v490 = vmax.f32 %v458, 0.0
        %v491 = vmax.f32 %v460, 0.0
        %v492 = vmax.f32 %v463, 0.0
        %v493 = vmax.f32 %v465, 0.0
        %v494 = vmax.f32 %v468, 0.0
        %v495 = vmax.f32 %v470, 0.0
        %v496 = vmax.f32 %v473, 0.0
        %v497 = vmax.f32 %v475, 0.0
        %v498 = vmax.f32 %v478, 0.0
        %v499 = vmax.f32 %v480, 0.0
        %v500 = vlaneseq
        %v501 = vshrl.u32 %v500, 7
        %v502 = vadd.s32 %v501, 8
        %v503 = vadd.s32 %v501, 16
        %vm504 = vcmp.ge.s32.totalorder %v501, 1
        %vm505 = vcmp.ge.s32.totalorder %v502, 1
        %vm506 = vcmp.ge.s32.totalorder %v503, 1
        %vm507 = vcmp.le.s32.totalorder %v501, 16
        %vm508 = vcmp.le.s32.totalorder %v502, 16
        %vm509 = vcmp.le.s32.totalorder %v503, 16
        %vm510 = vmand %vm504, %vm507
        %vm511 = vmand %vm505, %vm508
        %vm512 = vmand %vm506, %vm509
        %p513 = scmp.gt.s32.totalorder %s27, 0
        %s514 = scalar_select %p513, 1, 0
        %v515 = vstv %s514
        %vm516 = vcmp.eq.s32.totalorder %v515, 1
        %v517 = vsel %vm510, 1, 0
        %v518 = vsel %vm511, 1, 0
        %v519 = vsel %vm512, 1, 0
        %vm520 = vcmp.eq.s32.totalorder %v517, 1
        %vm521 = vcmp.eq.s32.totalorder %v518, 1
        %vm522 = vcmp.eq.s32.totalorder %v519, 1
        %v523 = vsel %vm516, 1, 0
        %vm524 = vcmp.eq.s32.totalorder %v523, 1
        %vm525 = vmand %vm520, %vm524
        %vm526 = vmand %vm521, %vm524
        %vm527 = vmand %vm522, %vm524
        %vm528 = vmand %vm520, 1
        %vm529 = vmand %vm521, 1
        %vm530 = vmand %vm522, 1
        %p531 = scmp.lt.s32.totalorder %s27, 3
        %s532 = scalar_select %p531, 1, 0
        %v533 = vstv %s532
        %vm534 = vcmp.eq.s32.totalorder %v533, 1
        %v535 = vsel %vm534, 1, 0
        %vm536 = vcmp.eq.s32.totalorder %v535, 1
        %vm537 = vmand %vm525, 1
        %vm538 = vmand %vm526, 1
        %vm539 = vmand %vm527, 1
        %vm540 = vmand %vm528, %vm536
        %vm541 = vmand %vm529, %vm536
        %vm542 = vmand %vm530, %vm536
        %v543 = vsel %vm537, 1, 0
        %v544 = vsel %vm538, 1, 0
        %v545 = vsel %vm539, 1, 0
        %v546 = vsel %vm528, 1, 0
        %v547 = vsel %vm529, 1, 0
        %v548 = vsel %vm530, 1, 0
        %v549 = vsel %vm540, 1, 0
        %v550 = vsel %vm541, 1, 0
        %v551 = vsel %vm542, 1, 0
        %vm552 = vcmp.eq.s32.totalorder %v543, 1
        %vm553 = vcmp.eq.s32.totalorder %v544, 1
        %vm554 = vcmp.eq.s32.totalorder %v545, 1
        %vm555 = vcmp.eq.s32.totalorder %v546, 1
        %vm556 = vcmp.eq.s32.totalorder %v547, 1
        %vm557 = vcmp.eq.s32.totalorder %v548, 1
        %vm558 = vcmp.eq.s32.totalorder %v549, 1
        %vm559 = vcmp.eq.s32.totalorder %v550, 1
        %vm560 = vcmp.eq.s32.totalorder %v551, 1
        %v561 = vsel %vm552, %v482, 0.0
        %v562 = vsel %vm553, %v483, 0.0
        %v563 = vsel %vm554, %v484, 0.0
        %v564 = vsel %vm555, %v485, 0.0
        %v565 = vsel %vm556, %v486, 0.0
        %v566 = vsel %vm557, %v487, 0.0
        %v567 = vsel %vm555, %v488, 0.0
        %v568 = vsel %vm556, %v489, 0.0
        %v569 = vsel %vm557, %v490, 0.0
        %v570 = vsel %vm555, %v491, 0.0
        %v571 = vsel %vm556, %v492, 0.0
        %v572 = vsel %vm557, %v493, 0.0
        %v573 = vsel %vm555, %v494, 0.0
        %v574 = vsel %vm556, %v495, 0.0
        %v575 = vsel %vm557, %v496, 0.0
        %v576 = vsel %vm558, %v497, 0.0
        %v577 = vsel %vm559, %v498, 0.0
        %v578 = vsel %vm560, %v499, 0.0
        %v579 = vpack.c.bf16 %v561, %v561
        %v580 = vpack.c.bf16 %v562, %v562
        %v581 = vpack.c.bf16 %v563, %v563
        %v582 = vpack.c.bf16 %v564, %v564
        %v583 = vpack.c.bf16 %v565, %v565
        %v584 = vpack.c.bf16 %v566, %v566
        %v585 = vpack.c.bf16 %v567, %v567
        %v586 = vpack.c.bf16 %v568, %v568
        %v587 = vpack.c.bf16 %v569, %v569
        %v588 = vpack.c.bf16 %v570, %v570
        %v589 = vpack.c.bf16 %v571, %v571
        %v590 = vpack.c.bf16 %v572, %v572
        %v591 = vpack.c.bf16 %v573, %v573
        %v592 = vpack.c.bf16 %v574, %v574
        %v593 = vpack.c.bf16 %v575, %v575
        %v594 = vpack.c.bf16 %v576, %v576
        %v595 = vpack.c.bf16 %v577, %v577
        %v596 = vpack.c.bf16 %v578, %v578
        %v597 = vld [vmem:[#allocation4] sm:$0xf]
        %v598 = vld [vmem:[#allocation4 + $0x4] sm:$0xf]
        %v599 = vld [vmem:[#allocation4 + $0x8] sm:$0xf]
        %v600 = vld [vmem:[#allocation4 + $0xc] sm:$0xf]
        %vm601 = vsmask.f32 3328
        %vm602 = vsmask.f32 7440
        %vm603 = vmor %vm601, %vm602
        %v605 = vshrl.u32 %v579, 16
        %v607 = vrot.slane %v605, 4
        %v608 = vshll.u32 %v579, 16
        %v610 = vrot.slane %v608, 5
        %v611 = vor.u32 %v607, %v610
        %v612 = vrot.slane %v611, 4
        %v614 = vshll.u32 %v580, 16
        %v616 = vrot.slane %v614, 5
        %v617 = vsel %vm603, %v612, %v616
        %v618 = vshrl.u32 %v580, 16
        %v620 = vrot.slane %v618, 4
        %v621 = vor.u32 %v620, %v616
        %v622 = vrot.slane %v621, 4
        %v624 = vshll.u32 %v581, 16
        %v626 = vrot.slane %v624, 5
        %v627 = vsel %vm603, %v622, %v626
        %v629 = vshrl.u32 %v582, 16
        %v631 = vrot.slane %v629, 4
        %v632 = vshll.u32 %v582, 16
        %v634 = vrot.slane %v632, 5
        %v635 = vor.u32 %v631, %v634
        %v636 = vrot.slane %v635, 4
        %v638 = vshll.u32 %v583, 16
        %v640 = vrot.slane %v638, 5
        %v641 = vsel %vm603, %v636, %v640
        %v642 = vshrl.u32 %v583, 16
        %v644 = vrot.slane %v642, 4
        %v645 = vor.u32 %v644, %v640
        %v646 = vrot.slane %v645, 4
        %v648 = vshll.u32 %v584, 16
        %v650 = vrot.slane %v648, 5
        %v651 = vsel %vm603, %v646, %v650
        %v653 = vshrl.u32 %v585, 16
        %v655 = vrot.slane %v653, 4
        %v656 = vshll.u32 %v585, 16
        %v658 = vrot.slane %v656, 5
        %v659 = vor.u32 %v655, %v658
        %v660 = vrot.slane %v659, 4
        %v662 = vshll.u32 %v586, 16
        %v664 = vrot.slane %v662, 5
        %v665 = vsel %vm603, %v660, %v664
        %v666 = vshrl.u32 %v586, 16
        %v668 = vrot.slane %v666, 4
        %v669 = vor.u32 %v668, %v664
        %v670 = vrot.slane %v669, 4
        %v672 = vshll.u32 %v587, 16
        %v674 = vrot.slane %v672, 5
        %v675 = vsel %vm603, %v670, %v674
        %v677 = vshrl.u32 %v588, 16
        %v679 = vrot.slane %v677, 4
        %v680 = vshll.u32 %v588, 16
        %v682 = vrot.slane %v680, 5
        %v683 = vor.u32 %v679, %v682
        %v684 = vrot.slane %v683, 4
        %v686 = vshll.u32 %v589, 16
        %v688 = vrot.slane %v686, 5
        %v689 = vsel %vm603, %v684, %v688
        %v690 = vshrl.u32 %v589, 16
        %v692 = vrot.slane %v690, 4
        %v693 = vor.u32 %v692, %v688
        %v694 = vrot.slane %v693, 4
        %v696 = vshll.u32 %v590, 16
        %v698 = vrot.slane %v696, 5
        %v699 = vsel %vm603, %v694, %v698
        %s700 = scalar_lea.vmem [#allocation4], 16
        %v701 = vld [vmem:[%s700] sm:$0xf]
        %v702 = vld [vmem:[%s700 + $0x4] sm:$0xf]
        %v703 = vld [vmem:[%s700 + $0x8] sm:$0xf]
        %v704 = vld [vmem:[%s700 + $0xc] sm:$0xf]
        %v705 = vunpack.c.l.b16 %v617
        %v706 = vunpack.c.l.b16 %v627
        %v707 = vunpack.c.l.b16 %v641
        %v708 = vunpack.c.l.b16 %v651
        %v709 = vunpack.c.l.b16 %v665
        %v710 = vunpack.c.l.b16 %v675
        %v711 = vunpack.c.l.b16 %v689
        %v712 = vunpack.c.l.b16 %v699
        %v713 = vpack.c.b16 %v706, %v705
        %v714 = vpack.c.b16 %v708, %v707
        %v715 = vpack.c.b16 %v710, %v709
        %v716 = vpack.c.b16 %v712, %v711
        %v721 = vunpack.c.l.b16 %v701
        %v722 = vunpack.c.l.b16 %v702
        %v723 = vunpack.c.l.b16 %v703
        %v724 = vunpack.c.l.b16 %v704
        %v725 = vpack.c.b16 %v722, %v721
        %v726 = vpack.c.b16 %v724, %v723
        %vm729 = vcmask 261120
        %v731 = vsel %vm729, %v713, 0
        %v734 = vsel %vm729, %v714, 0
        %v737 = vsel %vm729, %v715, 0
        %v740 = vsel %vm729, %v716, 0
        %742 = vmatpush.bf16.msra.mxu0 0
        %743 = vmatpush.bf16.msra.mxu0 0
        %744 = vmatpush.bf16.msra.mxu0 0
        %745 = vmatpush.bf16.msra.mxu0 0
        %746 = vmatpush.bf16.msra.mxu0 0
        %747 = vmatpush.bf16.msra.mxu0 0
        %748 = vmatpush.bf16.msra.mxu0 %v726
        %749 = vmatpush.bf16.msra.mxu0 %v725
        %750 = vmatmul.bf16.gmra.mxu0 %v731
        %v751 = vpop.f32.mrf.mxu0
        %v752 = vadd.f32 0.0, %v751
        %v753 = vpop.f32.mrf.mxu0
        %v754 = vadd.f32 0.0, %v753
        %755 = vmatmul.bf16.gmra.mxu0 %v734
        %v756 = vpop.f32.mrf.mxu0
        %v757 = vadd.f32 0.0, %v756
        %v758 = vpop.f32.mrf.mxu0
        %v759 = vadd.f32 0.0, %v758
        %760 = vmatmul.bf16.gmra.mxu0 %v737
        %v761 = vpop.f32.mrf.mxu0
        %v762 = vadd.f32 0.0, %v761
        %v763 = vpop.f32.mrf.mxu0
        %v764 = vadd.f32 0.0, %v763
        %765 = vmatmul.bf16.gmra.mxu0 %v740
        %v766 = vpop.f32.mrf.mxu0
        %v767 = vadd.f32 0.0, %v766
        %v768 = vpop.f32.mrf.mxu0
        %v769 = vadd.f32 0.0, %v768
        %770 = vdwg.mxu0
        %v779 = vunpack.c.l.b16 %v579
        %v780 = vunpack.c.l.b16 %v580
        %v781 = vunpack.c.l.b16 %v582
        %v782 = vunpack.c.l.b16 %v583
        %v783 = vunpack.c.l.b16 %v585
        %v784 = vunpack.c.l.b16 %v586
        %v785 = vunpack.c.l.b16 %v588
        %v786 = vunpack.c.l.b16 %v589
        %v787 = vpack.c.b16 %v780, %v779
        %v788 = vpack.c.b16 %v782, %v781
        %v789 = vpack.c.b16 %v784, %v783
        %v790 = vpack.c.b16 %v786, %v785
        %v795 = vunpack.c.l.b16 %v597
        %v796 = vunpack.c.l.b16 %v598
        %v797 = vunpack.c.l.b16 %v599
        %v798 = vunpack.c.l.b16 %v600
        %v799 = vpack.c.b16 %v796, %v795
        %v800 = vpack.c.b16 %v798, %v797
        %v804 = vsel %vm729, %v787, 0
        %v807 = vsel %vm729, %v788, 0
        %v810 = vsel %vm729, %v789, 0
        %v813 = vsel %vm729, %v790, 0
        %815 = vmatpush.bf16.msra.mxu0 0
        %816 = vmatpush.bf16.msra.mxu0 0
        %817 = vmatpush.bf16.msra.mxu0 0
        %818 = vmatpush.bf16.msra.mxu0 0
        %819 = vmatpush.bf16.msra.mxu0 0
        %820 = vmatpush.bf16.msra.mxu0 0
        %821 = vmatpush.bf16.msra.mxu0 %v800
        %822 = vmatpush.bf16.msra.mxu0 %v799
        %823 = vmatmul.bf16.gmra.mxu0 %v804
        %v824 = vpop.f32.mrf.mxu0
        %v825 = vadd.f32 %v752, %v824
        %v826 = vpop.f32.mrf.mxu0
        %v827 = vadd.f32 %v754, %v826
        %828 = vmatmul.bf16.gmra.mxu0 %v807
        %v829 = vpop.f32.mrf.mxu0
        %v830 = vadd.f32 %v757, %v829
        %v831 = vpop.f32.mrf.mxu0
        %v832 = vadd.f32 %v759, %v831
        %833 = vmatmul.bf16.gmra.mxu0 %v810
        %v834 = vpop.f32.mrf.mxu0
        %v835 = vadd.f32 %v762, %v834
        %v836 = vpop.f32.mrf.mxu0
        %v837 = vadd.f32 %v764, %v836
        %838 = vmatmul.bf16.gmra.mxu0 %v813
        %v839 = vpop.f32.mrf.mxu0
        %v840 = vadd.f32 %v767, %v839
        %v841 = vpop.f32.mrf.mxu0
        %v842 = vadd.f32 %v769, %v841
        %843 = vdwg.mxu0
        %vm848 = vcmask 1042432
        %vm849 = vcmask 1046532
        %vm850 = vmor %vm848, %vm849
        %v851 = vrot.slane %v579, 5
        %v852 = vrot.slane %v851, 4
        %v853 = vrot.slane %v580, 5
        %v854 = vsel %vm850, %v852, %v853
        %v855 = vrot.slane %v853, 4
        %v856 = vrot.slane %v581, 5
        %v857 = vsel %vm850, %v855, %v856
        %v858 = vrot.slane %v582, 5
        %v859 = vrot.slane %v858, 4
        %v860 = vrot.slane %v583, 5
        %v861 = vsel %vm850, %v859, %v860
        %v862 = vrot.slane %v860, 4
        %v863 = vrot.slane %v584, 5
        %v864 = vsel %vm850, %v862, %v863
        %v865 = vrot.slane %v585, 5
        %v866 = vrot.slane %v865, 4
        %v867 = vrot.slane %v586, 5
        %v868 = vsel %vm850, %v866, %v867
        %v869 = vrot.slane %v867, 4
        %v870 = vrot.slane %v587, 5
        %v871 = vsel %vm850, %v869, %v870
        %v872 = vrot.slane %v588, 5
        %v873 = vrot.slane %v872, 4
        %v874 = vrot.slane %v589, 5
        %v875 = vsel %vm850, %v873, %v874
        %v876 = vrot.slane %v874, 4
        %v877 = vrot.slane %v590, 5
        %v878 = vsel %vm850, %v876, %v877
        %s879 = scalar_lea.vmem [#allocation4], 32
        %v880 = vld [vmem:[%s879] sm:$0xf]
        %v881 = vld [vmem:[%s879 + $0x4] sm:$0xf]
        %v882 = vld [vmem:[%s879 + $0x8] sm:$0xf]
        %v883 = vld [vmem:[%s879 + $0xc] sm:$0xf]
        %v884 = vunpack.c.l.b16 %v854
        %v885 = vunpack.c.l.b16 %v857
        %v886 = vunpack.c.l.b16 %v861
        %v887 = vunpack.c.l.b16 %v864
        %v888 = vunpack.c.l.b16 %v868
        %v889 = vunpack.c.l.b16 %v871
        %v890 = vunpack.c.l.b16 %v875
        %v891 = vunpack.c.l.b16 %v878
        %v892 = vpack.c.b16 %v885, %v884
        %v893 = vpack.c.b16 %v887, %v886
        %v894 = vpack.c.b16 %v889, %v888
        %v895 = vpack.c.b16 %v891, %v890
        %v900 = vunpack.c.l.b16 %v880
        %v901 = vunpack.c.l.b16 %v881
        %v902 = vunpack.c.l.b16 %v882
        %v903 = vunpack.c.l.b16 %v883
        %v904 = vpack.c.b16 %v901, %v900
        %v905 = vpack.c.b16 %v903, %v902
        %v909 = vsel %vm729, %v892, 0
        %v912 = vsel %vm729, %v893, 0
        %v915 = vsel %vm729, %v894, 0
        %v918 = vsel %vm729, %v895, 0
        %920 = vmatpush.bf16.msra.mxu0 0
        %921 = vmatpush.bf16.msra.mxu0 0
        %922 = vmatpush.bf16.msra.mxu0 0
        %923 = vmatpush.bf16.msra.mxu0 0
        %924 = vmatpush.bf16.msra.mxu0 0
        %925 = vmatpush.bf16.msra.mxu0 0
        %926 = vmatpush.bf16.msra.mxu0 %v905
        %927 = vmatpush.bf16.msra.mxu0 %v904
        %928 = vmatmul.bf16.gmra.mxu0 %v909
        %v929 = vpop.f32.mrf.mxu0
        %v930 = vadd.f32 0.0, %v929
        %v931 = vpop.f32.mrf.mxu0
        %v932 = vadd.f32 0.0, %v931
        %933 = vmatmul.bf16.gmra.mxu0 %v912
        %v934 = vpop.f32.mrf.mxu0
        %v935 = vadd.f32 0.0, %v934
        %v936 = vpop.f32.mrf.mxu0
        %v937 = vadd.f32 0.0, %v936
        %938 = vmatmul.bf16.gmra.mxu0 %v915
        %v939 = vpop.f32.mrf.mxu0
        %v940 = vadd.f32 0.0, %v939
        %v941 = vpop.f32.mrf.mxu0
        %v942 = vadd.f32 0.0, %v941
        %943 = vmatmul.bf16.gmra.mxu0 %v918
        %v944 = vpop.f32.mrf.mxu0
        %v945 = vadd.f32 0.0, %v944
        %v946 = vpop.f32.mrf.mxu0
        %v947 = vadd.f32 0.0, %v946
        %948 = vdwg.mxu0
        %v949 = vadd.f32 %v825, %v930
        %v950 = vadd.f32 %v827, %v932
        %v951 = vadd.f32 %v830, %v935
        %v952 = vadd.f32 %v832, %v937
        %v953 = vadd.f32 %v835, %v940
        %v954 = vadd.f32 %v837, %v942
        %v955 = vadd.f32 %v840, %v945
        %v956 = vadd.f32 %v842, %v947
        %s957 = scalar_lea.vmem [#allocation4], 48
        %v958 = vld [vmem:[%s957] sm:$0xf]
        %v959 = vld [vmem:[%s957 + $0x4] sm:$0xf]
        %v960 = vld [vmem:[%s957 + $0x8] sm:$0xf]
        %v961 = vld [vmem:[%s957 + $0xc] sm:$0xf]
        %v964 = vunpack.c.l.b16 %v591
        %v965 = vunpack.c.l.b16 %v592
        %v966 = vpack.c.b16 %v965, %v964
        %v971 = vunpack.c.l.b16 %v958
        %v972 = vunpack.c.l.b16 %v959
        %v973 = vunpack.c.l.b16 %v960
        %v974 = vunpack.c.l.b16 %v961
        %v975 = vpack.c.b16 %v972, %v971
        %v976 = vpack.c.b16 %v974, %v973
        %v980 = vsel %vm729, %v966, 0
        %982 = vmatpush.bf16.msra.mxu0 0
        %983 = vmatpush.bf16.msra.mxu0 0
        %984 = vmatpush.bf16.msra.mxu0 0
        %985 = vmatpush.bf16.msra.mxu0 0
        %986 = vmatpush.bf16.msra.mxu0 0
        %987 = vmatpush.bf16.msra.mxu0 0
        %988 = vmatpush.bf16.msra.mxu0 %v976
        %989 = vmatpush.bf16.msra.mxu0 %v975
        %990 = vmatmul.bf16.gmra.mxu0 %v807
        %v991 = vpop.f32.mrf.mxu0
        %v992 = vadd.f32 0.0, %v991
        %v993 = vpop.f32.mrf.mxu0
        %v994 = vadd.f32 0.0, %v993
        %995 = vmatmul.bf16.gmra.mxu0 %v810
        %v996 = vpop.f32.mrf.mxu0
        %v997 = vadd.f32 0.0, %v996
        %v998 = vpop.f32.mrf.mxu0
        %v999 = vadd.f32 0.0, %v998
        %1000 = vmatmul.bf16.gmra.mxu0 %v813
        %v1001 = vpop.f32.mrf.mxu0
        %v1002 = vadd.f32 0.0, %v1001
        %v1003 = vpop.f32.mrf.mxu0
        %v1004 = vadd.f32 0.0, %v1003
        %1005 = vmatmul.bf16.gmra.mxu0 %v980
        %v1006 = vpop.f32.mrf.mxu0
        %v1007 = vadd.f32 0.0, %v1006
        %v1008 = vpop.f32.mrf.mxu0
        %v1009 = vadd.f32 0.0, %v1008
        %1010 = vdwg.mxu0
        %v1011 = vadd.f32 %v949, %v992
        %v1012 = vadd.f32 %v950, %v994
        %v1013 = vadd.f32 %v951, %v997
        %v1014 = vadd.f32 %v952, %v999
        %v1015 = vadd.f32 %v953, %v1002
        %v1016 = vadd.f32 %v954, %v1004
        %v1017 = vadd.f32 %v955, %v1007
        %v1018 = vadd.f32 %v956, %v1009
        %v1020 = vshrl.u32 %v591, 16
        %v1022 = vrot.slane %v1020, 4
        %v1023 = vshll.u32 %v591, 16
        %v1025 = vrot.slane %v1023, 5
        %v1026 = vor.u32 %v1022, %v1025
        %v1027 = vrot.slane %v1026, 4
        %v1029 = vshll.u32 %v592, 16
        %v1031 = vrot.slane %v1029, 5
        %v1032 = vsel %vm603, %v1027, %v1031
        %v1033 = vshrl.u32 %v592, 16
        %v1035 = vrot.slane %v1033, 4
        %v1036 = vor.u32 %v1035, %v1031
        %v1037 = vrot.slane %v1036, 4
        %v1039 = vshll.u32 %v593, 16
        %v1041 = vrot.slane %v1039, 5
        %v1042 = vsel %vm603, %v1037, %v1041
        %s1043 = scalar_lea.vmem [#allocation4], 64
        %v1044 = vld [vmem:[%s1043] sm:$0xf]
        %v1045 = vld [vmem:[%s1043 + $0x4] sm:$0xf]
        %v1046 = vld [vmem:[%s1043 + $0x8] sm:$0xf]
        %v1047 = vld [vmem:[%s1043 + $0xc] sm:$0xf]
        %v1048 = vunpack.c.l.b16 %v1032
        %v1049 = vunpack.c.l.b16 %v1042
        %v1050 = vpack.c.b16 %v1049, %v1048
        %v1055 = vunpack.c.l.b16 %v1044
        %v1056 = vunpack.c.l.b16 %v1045
        %v1057 = vunpack.c.l.b16 %v1046
        %v1058 = vunpack.c.l.b16 %v1047
        %v1059 = vpack.c.b16 %v1056, %v1055
        %v1060 = vpack.c.b16 %v1058, %v1057
        %v1064 = vsel %vm729, %v1050, 0
        %1066 = vmatpush.bf16.msra.mxu0 0
        %1067 = vmatpush.bf16.msra.mxu0 0
        %1068 = vmatpush.bf16.msra.mxu0 0
        %1069 = vmatpush.bf16.msra.mxu0 0
        %1070 = vmatpush.bf16.msra.mxu0 0
        %1071 = vmatpush.bf16.msra.mxu0 0
        %1072 = vmatpush.bf16.msra.mxu0 %v1060
        %1073 = vmatpush.bf16.msra.mxu0 %v1059
        %1074 = vmatmul.bf16.gmra.mxu0 %v734
        %v1075 = vpop.f32.mrf.mxu0
        %v1076 = vadd.f32 0.0, %v1075
        %v1077 = vpop.f32.mrf.mxu0
        %v1078 = vadd.f32 0.0, %v1077
        %1079 = vmatmul.bf16.gmra.mxu0 %v737
        %v1080 = vpop.f32.mrf.mxu0
        %v1081 = vadd.f32 0.0, %v1080
        %v1082 = vpop.f32.mrf.mxu0
        %v1083 = vadd.f32 0.0, %v1082
        %1084 = vmatmul.bf16.gmra.mxu0 %v740
        %v1085 = vpop.f32.mrf.mxu0
        %v1086 = vadd.f32 0.0, %v1085
        %v1087 = vpop.f32.mrf.mxu0
        %v1088 = vadd.f32 0.0, %v1087
        %1089 = vmatmul.bf16.gmra.mxu0 %v1064
        %v1090 = vpop.f32.mrf.mxu0
        %v1091 = vadd.f32 0.0, %v1090
        %v1092 = vpop.f32.mrf.mxu0
        %v1093 = vadd.f32 0.0, %v1092
        %1094 = vdwg.mxu0
        %v1095 = vadd.f32 %v1011, %v1076
        %v1096 = vadd.f32 %v1012, %v1078
        %v1097 = vadd.f32 %v1013, %v1081
        %v1098 = vadd.f32 %v1014, %v1083
        %v1099 = vadd.f32 %v1015, %v1086
        %v1100 = vadd.f32 %v1016, %v1088
        %v1101 = vadd.f32 %v1017, %v1091
        %v1102 = vadd.f32 %v1018, %v1093
        %v1104 = vrot.slane %v591, 5
        %v1105 = vrot.slane %v1104, 4
        %v1106 = vrot.slane %v592, 5
        %v1107 = vsel %vm850, %v1105, %v1106
        %v1108 = vrot.slane %v1106, 4
        %v1109 = vrot.slane %v593, 5
        %v1110 = vsel %vm850, %v1108, %v1109
        %s1111 = scalar_lea.vmem [#allocation4], 80
        %v1112 = vld [vmem:[%s1111] sm:$0xf]
        %v1113 = vld [vmem:[%s1111 + $0x4] sm:$0xf]
        %v1114 = vld [vmem:[%s1111 + $0x8] sm:$0xf]
        %v1115 = vld [vmem:[%s1111 + $0xc] sm:$0xf]
        %v1116 = vunpack.c.l.b16 %v1107
        %v1117 = vunpack.c.l.b16 %v1110
        %v1118 = vpack.c.b16 %v1117, %v1116
        %v1123 = vunpack.c.l.b16 %v1112
        %v1124 = vunpack.c.l.b16 %v1113
        %v1125 = vunpack.c.l.b16 %v1114
        %v1126 = vunpack.c.l.b16 %v1115
        %v1127 = vpack.c.b16 %v1124, %v1123
        %v1128 = vpack.c.b16 %v1126, %v1125
        %v1132 = vsel %vm729, %v1118, 0
        %1134 = vmatpush.bf16.msra.mxu0 0
        %1135 = vmatpush.bf16.msra.mxu0 0
        %1136 = vmatpush.bf16.msra.mxu0 0
        %1137 = vmatpush.bf16.msra.mxu0 0
        %1138 = vmatpush.bf16.msra.mxu0 0
        %1139 = vmatpush.bf16.msra.mxu0 0
        %1140 = vmatpush.bf16.msra.mxu0 %v1128
        %1141 = vmatpush.bf16.msra.mxu0 %v1127
        %1142 = vmatmul.bf16.gmra.mxu0 %v912
        %v1143 = vpop.f32.mrf.mxu0
        %v1144 = vadd.f32 0.0, %v1143
        %v1145 = vpop.f32.mrf.mxu0
        %v1146 = vadd.f32 0.0, %v1145
        %1147 = vmatmul.bf16.gmra.mxu0 %v915
        %v1148 = vpop.f32.mrf.mxu0
        %v1149 = vadd.f32 0.0, %v1148
        %v1150 = vpop.f32.mrf.mxu0
        %v1151 = vadd.f32 0.0, %v1150
        %1152 = vmatmul.bf16.gmra.mxu0 %v918
        %v1153 = vpop.f32.mrf.mxu0
        %v1154 = vadd.f32 0.0, %v1153
        %v1155 = vpop.f32.mrf.mxu0
        %v1156 = vadd.f32 0.0, %v1155
        %1157 = vmatmul.bf16.gmra.mxu0 %v1132
        %v1158 = vpop.f32.mrf.mxu0
        %v1159 = vadd.f32 0.0, %v1158
        %v1160 = vpop.f32.mrf.mxu0
        %v1161 = vadd.f32 0.0, %v1160
        %1162 = vdwg.mxu0
        %v1163 = vadd.f32 %v1095, %v1144
        %v1164 = vadd.f32 %v1096, %v1146
        %v1165 = vadd.f32 %v1097, %v1149
        %v1166 = vadd.f32 %v1098, %v1151
        %v1167 = vadd.f32 %v1099, %v1154
        %v1168 = vadd.f32 %v1100, %v1156
        %v1169 = vadd.f32 %v1101, %v1159
        %v1170 = vadd.f32 %v1102, %v1161
        %s1171 = scalar_lea.vmem [#allocation4], 96
        %v1172 = vld [vmem:[%s1171] sm:$0xf]
        %v1173 = vld [vmem:[%s1171 + $0x4] sm:$0xf]
        %v1174 = vld [vmem:[%s1171 + $0x8] sm:$0xf]
        %v1175 = vld [vmem:[%s1171 + $0xc] sm:$0xf]
        %v1178 = vunpack.c.l.b16 %v594
        %v1179 = vunpack.c.l.b16 %v595
        %v1180 = vpack.c.b16 %v1179, %v1178
        %v1185 = vunpack.c.l.b16 %v1172
        %v1186 = vunpack.c.l.b16 %v1173
        %v1187 = vunpack.c.l.b16 %v1174
        %v1188 = vunpack.c.l.b16 %v1175
        %v1189 = vpack.c.b16 %v1186, %v1185
        %v1190 = vpack.c.b16 %v1188, %v1187
        %v1194 = vsel %vm729, %v1180, 0
        %1196 = vmatpush.bf16.msra.mxu0 0
        %1197 = vmatpush.bf16.msra.mxu0 0
        %1198 = vmatpush.bf16.msra.mxu0 0
        %1199 = vmatpush.bf16.msra.mxu0 0
        %1200 = vmatpush.bf16.msra.mxu0 0
        %1201 = vmatpush.bf16.msra.mxu0 0
        %1202 = vmatpush.bf16.msra.mxu0 %v1190
        %1203 = vmatpush.bf16.msra.mxu0 %v1189
        %1204 = vmatmul.bf16.gmra.mxu0 %v810
        %v1205 = vpop.f32.mrf.mxu0
        %v1206 = vadd.f32 0.0, %v1205
        %v1207 = vpop.f32.mrf.mxu0
        %v1208 = vadd.f32 0.0, %v1207
        %1209 = vmatmul.bf16.gmra.mxu0 %v813
        %v1210 = vpop.f32.mrf.mxu0
        %v1211 = vadd.f32 0.0, %v1210
        %v1212 = vpop.f32.mrf.mxu0
        %v1213 = vadd.f32 0.0, %v1212
        %1214 = vmatmul.bf16.gmra.mxu0 %v980
        %v1215 = vpop.f32.mrf.mxu0
        %v1216 = vadd.f32 0.0, %v1215
        %v1217 = vpop.f32.mrf.mxu0
        %v1218 = vadd.f32 0.0, %v1217
        %1219 = vmatmul.bf16.gmra.mxu0 %v1194
        %v1220 = vpop.f32.mrf.mxu0
        %v1221 = vadd.f32 0.0, %v1220
        %v1222 = vpop.f32.mrf.mxu0
        %v1223 = vadd.f32 0.0, %v1222
        %1224 = vdwg.mxu0
        %v1225 = vadd.f32 %v1163, %v1206
        %v1226 = vadd.f32 %v1164, %v1208
        %v1227 = vadd.f32 %v1165, %v1211
        %v1228 = vadd.f32 %v1166, %v1213
        %v1229 = vadd.f32 %v1167, %v1216
        %v1230 = vadd.f32 %v1168, %v1218
        %v1231 = vadd.f32 %v1169, %v1221
        %v1232 = vadd.f32 %v1170, %v1223
        %v1234 = vshrl.u32 %v594, 16
        %v1236 = vrot.slane %v1234, 4
        %v1237 = vshll.u32 %v594, 16
        %v1239 = vrot.slane %v1237, 5
        %v1240 = vor.u32 %v1236, %v1239
        %v1241 = vrot.slane %v1240, 4
        %v1243 = vshll.u32 %v595, 16
        %v1245 = vrot.slane %v1243, 5
        %v1246 = vsel %vm603, %v1241, %v1245
        %v1247 = vshrl.u32 %v595, 16
        %v1249 = vrot.slane %v1247, 4
        %v1250 = vor.u32 %v1249, %v1245
        %v1251 = vrot.slane %v1250, 4
        %v1253 = vshll.u32 %v596, 16
        %v1255 = vrot.slane %v1253, 5
        %v1256 = vsel %vm603, %v1251, %v1255
        %s1257 = scalar_lea.vmem [#allocation4], 112
        %v1258 = vld [vmem:[%s1257] sm:$0xf]
        %v1259 = vld [vmem:[%s1257 + $0x4] sm:$0xf]
        %v1260 = vld [vmem:[%s1257 + $0x8] sm:$0xf]
        %v1261 = vld [vmem:[%s1257 + $0xc] sm:$0xf]
        %v1262 = vunpack.c.l.b16 %v1246
        %v1263 = vunpack.c.l.b16 %v1256
        %v1264 = vpack.c.b16 %v1263, %v1262
        %v1269 = vunpack.c.l.b16 %v1258
        %v1270 = vunpack.c.l.b16 %v1259
        %v1271 = vunpack.c.l.b16 %v1260
        %v1272 = vunpack.c.l.b16 %v1261
        %v1273 = vpack.c.b16 %v1270, %v1269
        %v1274 = vpack.c.b16 %v1272, %v1271
        %v1278 = vsel %vm729, %v1264, 0
        %1280 = vmatpush.bf16.msra.mxu0 0
        %1281 = vmatpush.bf16.msra.mxu0 0
        %1282 = vmatpush.bf16.msra.mxu0 0
        %1283 = vmatpush.bf16.msra.mxu0 0
        %1284 = vmatpush.bf16.msra.mxu0 0
        %1285 = vmatpush.bf16.msra.mxu0 0
        %1286 = vmatpush.bf16.msra.mxu0 %v1274
        %1287 = vmatpush.bf16.msra.mxu0 %v1273
        %1288 = vmatmul.bf16.gmra.mxu0 %v737
        %v1289 = vpop.f32.mrf.mxu0
        %v1290 = vadd.f32 0.0, %v1289
        %v1291 = vpop.f32.mrf.mxu0
        %v1292 = vadd.f32 0.0, %v1291
        %1293 = vmatmul.bf16.gmra.mxu0 %v740
        %v1294 = vpop.f32.mrf.mxu0
        %v1295 = vadd.f32 0.0, %v1294
        %v1296 = vpop.f32.mrf.mxu0
        %v1297 = vadd.f32 0.0, %v1296
        %1298 = vmatmul.bf16.gmra.mxu0 %v1064
        %v1299 = vpop.f32.mrf.mxu0
        %v1300 = vadd.f32 0.0, %v1299
        %v1301 = vpop.f32.mrf.mxu0
        %v1302 = vadd.f32 0.0, %v1301
        %1303 = vmatmul.bf16.gmra.mxu0 %v1278
        %v1304 = vpop.f32.mrf.mxu0
        %v1305 = vadd.f32 0.0, %v1304
        %v1306 = vpop.f32.mrf.mxu0
        %v1307 = vadd.f32 0.0, %v1306
        %1308 = vdwg.mxu0
        %v1309 = vadd.f32 %v1225, %v1290
        %v1310 = vadd.f32 %v1226, %v1292
        %v1311 = vadd.f32 %v1227, %v1295
        %v1312 = vadd.f32 %v1228, %v1297
        %v1313 = vadd.f32 %v1229, %v1300
        %v1314 = vadd.f32 %v1230, %v1302
        %v1315 = vadd.f32 %v1231, %v1305
        %v1316 = vadd.f32 %v1232, %v1307
        %v1318 = vrot.slane %v594, 5
        %v1319 = vrot.slane %v1318, 4
        %v1320 = vrot.slane %v595, 5
        %v1321 = vsel %vm850, %v1319, %v1320
        %v1322 = vrot.slane %v1320, 4
        %v1323 = vrot.slane %v596, 5
        %v1324 = vsel %vm850, %v1322, %v1323
        %s1325 = scalar_lea.vmem [#allocation4], 128
        %v1326 = vld [vmem:[%s1325] sm:$0xf]
        %v1327 = vld [vmem:[%s1325 + $0x4] sm:$0xf]
        %v1328 = vld [vmem:[%s1325 + $0x8] sm:$0xf]
        %v1329 = vld [vmem:[%s1325 + $0xc] sm:$0xf]
        %v1330 = vunpack.c.l.b16 %v1321
        %v1331 = vunpack.c.l.b16 %v1324
        %v1332 = vpack.c.b16 %v1331, %v1330
        %v1337 = vunpack.c.l.b16 %v1326
        %v1338 = vunpack.c.l.b16 %v1327
        %v1339 = vunpack.c.l.b16 %v1328
        %v1340 = vunpack.c.l.b16 %v1329
        %v1341 = vpack.c.b16 %v1338, %v1337
        %v1342 = vpack.c.b16 %v1340, %v1339
        %v1346 = vsel %vm729, %v1332, 0
        %1348 = vmatpush.bf16.msra.mxu0 0
        %1349 = vmatpush.bf16.msra.mxu0 0
        %1350 = vmatpush.bf16.msra.mxu0 0
        %1351 = vmatpush.bf16.msra.mxu0 0
        %1352 = vmatpush.bf16.msra.mxu0 0
        %1353 = vmatpush.bf16.msra.mxu0 0
        %1354 = vmatpush.bf16.msra.mxu0 %v1342
        %1355 = vmatpush.bf16.msra.mxu0 %v1341
        %1356 = vmatmul.bf16.gmra.mxu0 %v915
        %v1357 = vpop.f32.mrf.mxu0
        %v1358 = vadd.f32 0.0, %v1357
        %v1359 = vpop.f32.mrf.mxu0
        %v1360 = vadd.f32 0.0, %v1359
        %1361 = vmatmul.bf16.gmra.mxu0 %v918
        %v1362 = vpop.f32.mrf.mxu0
        %v1363 = vadd.f32 0.0, %v1362
        %v1364 = vpop.f32.mrf.mxu0
        %v1365 = vadd.f32 0.0, %v1364
        %1366 = vmatmul.bf16.gmra.mxu0 %v1132
        %v1367 = vpop.f32.mrf.mxu0
        %v1368 = vadd.f32 0.0, %v1367
        %v1369 = vpop.f32.mrf.mxu0
        %v1370 = vadd.f32 0.0, %v1369
        %1371 = vmatmul.bf16.gmra.mxu0 %v1346
        %v1372 = vpop.f32.mrf.mxu0
        %v1373 = vadd.f32 0.0, %v1372
        %v1374 = vpop.f32.mrf.mxu0
        %v1375 = vadd.f32 0.0, %v1374
        %1376 = vdwg.mxu0
        %v1377 = vadd.f32 %v1309, %v1358
        %v1378 = vadd.f32 %v1310, %v1360
        %v1379 = vadd.f32 %v1311, %v1363
        %v1380 = vadd.f32 %v1312, %v1365
        %v1381 = vadd.f32 %v1313, %v1368
        %v1382 = vadd.f32 %v1314, %v1370
        %v1383 = vadd.f32 %v1315, %v1373
        %v1384 = vadd.f32 %v1316, %v1375
        %v1385 = vld [vmem:[%s3] sm:$0x1]
        %v1387 = vperm.slane %v1385, 0
        %v1389 = vadd.f32 %v1377, %v1387
        %v1390 = vadd.f32 %v1378, %v1387
        %v1391 = vadd.f32 %v1379, %v1387
        %v1392 = vadd.f32 %v1380, %v1387
        %v1393 = vadd.f32 %v1381, %v1387
        %v1394 = vadd.f32 %v1382, %v1387
        %v1395 = vadd.f32 %v1383, %v1387
        %v1396 = vadd.f32 %v1384, %v1387
        %v1397 = vmax.f32 %v1389, 0.0
        %v1398 = vmax.f32 %v1390, 0.0
        %v1399 = vmax.f32 %v1391, 0.0
        %v1400 = vmax.f32 %v1392, 0.0
        %v1401 = vmax.f32 %v1393, 0.0
        %v1402 = vmax.f32 %v1394, 0.0
        %v1403 = vmax.f32 %v1395, 0.0
        %v1404 = vmax.f32 %v1396, 0.0
        %v1405 = vpack.c.bf16 %v1398, %v1397
        %v1406 = vpack.c.bf16 %v1400, %v1399
        %v1407 = vpack.c.bf16 %v1402, %v1401
        %v1408 = vpack.c.bf16 %v1404, %v1403
        %v1410 = vshrl.u32 %v291, 16
        %v1412 = vrot.slane %v1410, 4
        %v1413 = vshll.u32 %v291, 16
        %v1415 = vrot.slane %v1413, 5
        %v1416 = vor.u32 %v1412, %v1415
        %v1417 = vrot.slane %v1416, 4
        %v1419 = vshll.u32 %v292, 16
        %v1421 = vrot.slane %v1419, 5
        %v1422 = vsel %vm603, %v1417, %v1421
        %v1423 = vshrl.u32 %v292, 16
        %v1425 = vrot.slane %v1423, 4
        %v1426 = vor.u32 %v1425, %v1421
        %v1427 = vrot.slane %v1426, 4
        %v1429 = vshll.u32 %v293, 16
        %v1431 = vrot.slane %v1429, 5
        %v1432 = vsel %vm603, %v1427, %v1431
        %v1434 = vshrl.u32 %v294, 16
        %v1436 = vrot.slane %v1434, 4
        %v1437 = vshll.u32 %v294, 16
        %v1439 = vrot.slane %v1437, 5
        %v1440 = vor.u32 %v1436, %v1439
        %v1441 = vrot.slane %v1440, 4
        %v1443 = vshll.u32 %v295, 16
        %v1445 = vrot.slane %v1443, 5
        %v1446 = vsel %vm603, %v1441, %v1445
        %v1447 = vshrl.u32 %v295, 16
        %v1449 = vrot.slane %v1447, 4
        %v1450 = vor.u32 %v1449, %v1445
        %v1451 = vrot.slane %v1450, 4
        %v1453 = vshll.u32 %v296, 16
        %v1455 = vrot.slane %v1453, 5
        %v1456 = vsel %vm603, %v1451, %v1455
        %v1458 = vshrl.u32 %v297, 16
        %v1460 = vrot.slane %v1458, 4
        %v1461 = vshll.u32 %v297, 16
        %v1463 = vrot.slane %v1461, 5
        %v1464 = vor.u32 %v1460, %v1463
        %v1465 = vrot.slane %v1464, 4
        %v1467 = vshll.u32 %v298, 16
        %v1469 = vrot.slane %v1467, 5
        %v1470 = vsel %vm603, %v1465, %v1469
        %v1471 = vshrl.u32 %v298, 16
        %v1473 = vrot.slane %v1471, 4
        %v1474 = vor.u32 %v1473, %v1469
        %v1475 = vrot.slane %v1474, 4
        %v1477 = vshll.u32 %v299, 16
        %v1479 = vrot.slane %v1477, 5
        %v1480 = vsel %vm603, %v1475, %v1479
        %v1482 = vshrl.u32 %v300, 16
        %v1484 = vrot.slane %v1482, 4
        %v1485 = vshll.u32 %v300, 16
        %v1487 = vrot.slane %v1485, 5
        %v1488 = vor.u32 %v1484, %v1487
        %v1489 = vrot.slane %v1488, 4
        %v1491 = vshll.u32 %v301, 16
        %v1493 = vrot.slane %v1491, 5
        %v1494 = vsel %vm603, %v1489, %v1493
        %v1495 = vshrl.u32 %v301, 16
        %v1497 = vrot.slane %v1495, 4
        %v1498 = vor.u32 %v1497, %v1493
        %v1499 = vrot.slane %v1498, 4
        %v1501 = vshll.u32 %v302, 16
        %v1503 = vrot.slane %v1501, 5
        %v1504 = vsel %vm603, %v1499, %v1503
        %v1513 = vunpack.c.l.bf16 %v1422
        %v1514 = vunpack.c.l.bf16 %v1432
        %v1515 = vunpack.c.l.bf16 %v1446
        %v1516 = vunpack.c.l.bf16 %v1456
        %v1517 = vunpack.c.l.bf16 %v1470
        %v1518 = vunpack.c.l.bf16 %v1480
        %v1519 = vunpack.c.l.bf16 %v1494
        %v1520 = vunpack.c.l.bf16 %v1504
        %v1521 = vld [vmem:[%s4] sm:$0xf]
        %v1522 = vld [vmem:[%s4 + $0x4] sm:$0xf]
        %v1523 = vld [vmem:[%s4 + $0x8] sm:$0xf]
        %v1524 = vld [vmem:[%s4 + $0xc] sm:$0xf]
        %v1525 = vld [vmem:[%s5] sm:$0x1]
        %v1527 = vperm.slane %v1525, 0
        %v1533 = vunpack.c.l.b16 %v1521
        %v1534 = vunpack.c.l.b16 %v1522
        %v1535 = vunpack.c.l.b16 %v1523
        %v1536 = vunpack.c.l.b16 %v1524
        %v1537 = vpack.c.b16 %v1534, %v1533
        %v1538 = vpack.c.b16 %v1536, %v1535
        %v1542 = vsel %vm729, %v1405, 0
        %v1545 = vsel %vm729, %v1406, 0
        %v1548 = vsel %vm729, %v1407, 0
        %v1551 = vsel %vm729, %v1408, 0
        %1553 = vmatpush.bf16.msra.mxu0 0
        %1554 = vmatpush.bf16.msra.mxu0 0
        %1555 = vmatpush.bf16.msra.mxu0 0
        %1556 = vmatpush.bf16.msra.mxu0 0
        %1557 = vmatpush.bf16.msra.mxu0 0
        %1558 = vmatpush.bf16.msra.mxu0 0
        %1559 = vmatpush.bf16.msra.mxu0 %v1538
        %1560 = vmatpush.bf16.msra.mxu0 %v1537
        %1561 = vmatmul.bf16.gmra.mxu0 %v1542
        %v1562 = vpop.f32.mrf.mxu0
        %v1563 = vadd.f32 %v1527, %v1562
        %v1564 = vpop.f32.mrf.mxu0
        %v1565 = vadd.f32 %v1527, %v1564
        %1566 = vmatmul.bf16.gmra.mxu0 %v1545
        %v1567 = vpop.f32.mrf.mxu0
        %v1568 = vadd.f32 %v1527, %v1567
        %v1569 = vpop.f32.mrf.mxu0
        %v1570 = vadd.f32 %v1527, %v1569
        %1571 = vmatmul.bf16.gmra.mxu0 %v1548
        %v1572 = vpop.f32.mrf.mxu0
        %v1573 = vadd.f32 %v1527, %v1572
        %v1574 = vpop.f32.mrf.mxu0
        %v1575 = vadd.f32 %v1527, %v1574
        %1576 = vmatmul.bf16.gmra.mxu0 %v1551
        %v1577 = vpop.f32.mrf.mxu0
        %v1578 = vadd.f32 %v1527, %v1577
        %v1579 = vpop.f32.mrf.mxu0
        %v1580 = vadd.f32 %v1527, %v1579
        %1581 = vdwg.mxu0
        %v1582 = vadd.f32 %v1563, %v1513
        %v1583 = vadd.f32 %v1565, %v1514
        %v1584 = vadd.f32 %v1568, %v1515
        %v1585 = vadd.f32 %v1570, %v1516
        %v1586 = vadd.f32 %v1573, %v1517
        %v1587 = vadd.f32 %v1575, %v1518
        %v1588 = vadd.f32 %v1578, %v1519
        %v1589 = vadd.f32 %v1580, %v1520
        %v1590 = vmax.f32 %v1582, 0.0
        %v1591 = vmax.f32 %v1583, 0.0
        %v1592 = vmax.f32 %v1584, 0.0
        %v1593 = vmax.f32 %v1585, 0.0
        %v1594 = vmax.f32 %v1586, 0.0
        %v1595 = vmax.f32 %v1587, 0.0
        %v1596 = vmax.f32 %v1588, 0.0
        %v1597 = vmax.f32 %v1589, 0.0
        %v1598 = vpack.c.bf16 %v1590, %v1590
        %v1599 = vpack.c.bf16 %v1591, %v1591
        %v1600 = vpack.c.bf16 %v1592, %v1592
        %v1601 = vpack.c.bf16 %v1593, %v1593
        %v1602 = vpack.c.bf16 %v1594, %v1594
        %v1603 = vpack.c.bf16 %v1595, %v1595
        %v1604 = vpack.c.bf16 %v1596, %v1596
        %v1605 = vpack.c.bf16 %v1597, %v1597
        %1606 = vst [vmem:[%s261] sm:$0xf] %v1598
        %1607 = vst [vmem:[%s261 + $0x4] sm:$0xf] %v1599
        %1608 = vst [vmem:[%s261 + $0x8] sm:$0xf] %v1600
        %1609 = vst [vmem:[%s261 + $0xc] sm:$0xf] %v1601
        %1610 = vst [vmem:[%s261 + $0x10] sm:$0xf] %v1602
        %1611 = vst [vmem:[%s261 + $0x14] sm:$0xf] %v1603
        %1612 = vst [vmem:[%s261 + $0x18] sm:$0xf] %v1604
        %1613 = vst [vmem:[%s261 + $0x1c] sm:$0xf] %v1605
        %s1614 = sand.u32 %s170, 1
        %s1615 = scalar_lea.sflag [#allocation6], %s1614
        %s1616 = sand.u32 %s170, 1
        %s1617 = smul.addr %s1616, 32
        %s1618 = scalar_lea.vmem [#allocation7], %s1617
        // Predicated region
        $region53: #{tpu_custom_call.1} parent=43 // pred_check
          %p1619 = pneg %p180
        $region54: #{tpu_custom_call.1} parent=43 // pred_check_branch
          %1621 = sbr.rel (%p1619) target = $region56
        $region55: #{tpu_custom_call.1} parent=43 // pred_region
          %s1622 = smul.u32 4, %s27
          %1624 = vsyncadd %s1615, 0
          %s1625 = smul.addr %s1622, 2
          %s1626 = smul.addr %s26, 32
          %s1627 = sadd.s32 %s1625, %s1626
          %s1628 = smul.addr %s1627, 4
          %s1629 = scalar_lea.hbm %s7, %s1628
          %s1630 = sshll.u32 %s1618, 4
          %s1631 = int_to_ptr.vmem [resolvable:$true] %s1630
          %s1632 = sshll.u32 %s1629, 4
          %s1633 = int_to_ptr.hbm [resolvable:$true] %s1632
          %1638 = dma.vmem_to_hbm [thread:$0]  %s1631, 512, %s1633, %s1615, 64, 64, 4
        $region56: #{tpu_custom_call.1} parent=43 // pred_fallthru
          _
      $region44: #{tpu_custom_call.1} parent=5 // pred_fallthru
        _
      %p1639 = scmp.le.s32.totalorder 2, %s17
      // Predicated region
      $region57: #{tpu_custom_call.1} parent=5 // pred_check
        %p1640 = pneg %p1639
      $region58: #{tpu_custom_call.1} parent=5 // pred_check_branch
        %1642 = sbr.rel (%p1640) target = $region60
      $region59: #{tpu_custom_call.1} parent=5 // pred_region
        %s1643 = ssub.s32 %s17, 2
        // Predicated region
        $region61: #{tpu_custom_call.1} parent=59 // pred_check
          %p1644 = pneg %p186
        $region62: #{tpu_custom_call.1} parent=59 // pred_check_branch
          %1646 = sbr.rel (%p1644) target = $region64
        $region63: #{tpu_custom_call.1} parent=59 // pred_region
          %s1647 = sand.u32 %s171, 1
          %s1648 = scalar_lea.sflag [#allocation6], %s1647
          %s1649 = sand.u32 %s171, 1
          %s1650 = smul.addr %s1649, 32
          %s1651 = scalar_lea.vmem [#allocation7], %s1650
          %1653 = dma.done %s1648, 512
        $region64: #{tpu_custom_call.1} parent=59 // pred_fallthru
          _
      $region60: #{tpu_custom_call.1} parent=5 // pred_fallthru
        _
    $region6: #{tpu_custom_call.1} parent=1 // loop_footer
      %s21 = sadd.s32 1, %s17
    $region7: #{tpu_custom_call.1} parent=1 // loop_footer_branch
      %16 = sbr.rel target = $region3
    $region8: #{tpu_custom_call.1} parent=1 // loop_exit
      _
    %1654 = vsyncpa [#allocation5], 1
    %s1655 = scalar_lea.sflag [#allocation5], 1
    %1656 = vsyncpa %s1655, 1
    %1657 = vsyncpa [#allocation6], 1
    %s1658 = scalar_lea.sflag [#allocation6], 1
    %1659 = vsyncpa %s1658, 1
  %1660 = vsyncmov [#allocation3]
  %s1661 = vpop.sfrf %1660
  %p1662 = scmp.eq.s32.totalorder %s1661, 0
  %p1663 = pneg %p1662
  %1665 = shalt.err (%p1663)

</llo_original>
